<compile_context>
chip_gen: v5e
topology: v5e:2x2
jax: 0.10.0
libtpu: 0.0.40
codegen_flags: <defaults>
</compile_context>

<pallas_src>
import functools

import jax
import jax.numpy as jnp
import numpy as np
from jax.experimental import pallas as pl
from jax.experimental.pallas import tpu as pltpu

EPS = 1e-5          # nn.LayerNorm default eps
NEG_SLOPE = 0.01    # nn.LeakyReLU default negative slope


def _leaky(x):
    return jnp.where(x >= 0, x, NEG_SLOPE * x)


def _round_up(x, m):
    return ((x + m - 1) // m) * m


def att1_kernel(uid_ref, iatt_ref, vecs_ref, w_ref, out_ref, *, inv_d):
    """One grid step: bb4 packed rows, each holding `pack` batch elements in lanes."""
    bb4, n, L = iatt_ref.shape

    vecs = vecs_ref[...]                 # [8, L] packed (lane-tiled) small vectors
    gamma, beta = vecs[0:1, :], vecs[1:2, :]   # LayerNorm weight / bias
    bt, bw = vecs[2:3, :], vecs[3:4, :]        # trans / att Linear biases
    bf, bv = vecs[4:5, :], vecs[5:6, :]        # fused (bt@wwv) bias / score bias

    sum_b = w_ref[0]     # block-diag ones     -> per-segment (per-batch-elem) lane sums
    wt_b = w_ref[1]      # block-diag wt.T     -> trans Linear
    wwu_b = w_ref[2]     # block-diag ww_u.T   -> uid half of the cat Linear
    wf_b = w_ref[3]      # block-diag wt.T@ww_v.T -> fused value half of the cat Linear
    wv_b = w_ref[4]      # block-diag wv outer ones -> segmented score dot (replicated)

    def seg_ln(x):
        # LayerNorm over each D-lane segment; segment sums via the (otherwise idle) MXU.
        s1 = jnp.dot(x, sum_b, preferred_element_type=jnp.float32)
        s2 = jnp.dot(x * x, sum_b, preferred_element_type=jnp.float32)
        mean = s1 * inv_d
        var = s2 * inv_d - mean * mean
        return (x - mean) * jax.lax.rsqrt(var + EPS) * gamma + beta

    uid = seg_ln(uid_ref[...])                              # [bb4, L]
    # [bb4, N, L] -> [bb4*N, L]: N == 8 is one sublane tile, merge is layout-preserving.
    iatt = seg_ln(iatt_ref[...].reshape(bb4 * n, L))        # [bb4*N, L]

    # value = Linear_t(iatt); fused hv == value2 @ ww_v.T (same LHS -> better overlap)
    value2 = jnp.dot(iatt, wt_b, preferred_element_type=jnp.float32) + bt   # [bb4*N, L]
    hv = jnp.dot(iatt, wf_b, preferred_element_type=jnp.float32) + bf       # [bb4*N, L]
    hu = jnp.dot(uid, wwu_b, preferred_element_type=jnp.float32)            # [bb4, L]

    h = _leaky(hv.reshape(bb4, n, L) + hu.reshape(bb4, 1, L) + bw)          # [bb4, N, L]

    # score Linear: per-segment dot with wv, result replicated across the segment's lanes
    sc = jnp.dot(h.reshape(bb4 * n, L), wv_b,
                 preferred_element_type=jnp.float32).reshape(bb4, n, L) + bv

    # softmax over the N attribute rows (per lane; values are segment-replicated)
    m = jnp.max(sc, axis=-2, keepdims=True)
    e = jnp.exp(sc - m)
    denom = jnp.sum(e, axis=-2, keepdims=True)
    alphas = e * pl.reciprocal(denom, approx=True)          # EUP slot, ~free

    # value = layer_norm(value); att_value = (alphas * value).sum(dim=-2)
    vn = seg_ln(value2).reshape(bb4, n, L)
    att_value = jnp.sum(alphas * vn, axis=-2)               # [bb4, L] lane-dense

    # LeakyReLU; dropout in eval mode == identity. Single unmasked full-lane store.
    out_ref[...] = _leaky(att_value).astype(out_ref.dtype)


def att1_forward(embeddings, params, block_b=None):
    """embeddings: [B, S, D]; params in torch convention (Linear weight [out, in]).

    block_b = batch elements per grid step (auto-selected if None; sweep per chip).
    """
    B, S, D = embeddings.shape
    N = S - 1
    f32 = jnp.float32

    # Lane-pack `pack` batch elements per vreg row so the last dim is 128 lanes.
    pack = 128 // D if (D <= 128 and 128 % D == 0) else 1
    L = pack * D

    # ---- pick the per-step tile (bb4 packed rows == bb4*pack batch elements) ----
    Bq = -(-B // pack)                       # packed batch rows before block padding
    if block_b is None:
        bb4 = 128                            # ~512 batch elements/step at D=32
    else:
        bb4 = max(1, block_b // pack)
    if Bq <= 8:
        bb4 = Bq                             # single tiny block (full-dim BlockSpec)
    else:
        bb4 = min(bb4, -(-Bq // 2))          # keep >= 2 grid steps (v7x: 2 TensorCores)
        bb4 = _round_up(bb4, 8)              # sublane-aligned block
    n_blocks = -(-Bq // bb4)
    Bq_pad = n_blocks * bb4
    Bp = Bq_pad * pack

    # ---- parameters (torch convention) ----
    gamma = params["gamma"].astype(f32)
    beta = params["beta"].astype(f32)
    wt, bt = params["wt"].astype(f32), params["bt"].astype(f32)
    ww, bw = params["ww"].astype(f32), params["bw"].astype(f32)
    wv, bv = params["wv"].astype(f32), params["bv"].astype(f32)

    wt_t = wt.T                              # stored [in, out] -> no in-kernel .T
    wwu_t = ww[:, :D].T                      # cat = [uid, value]: uid half
    wwv_t = ww[:, D:].T                      # value half
    wf_t = wt_t @ wwv_t                      # fused: hv = iatt @ wf + bt@wwv
    bf = bt @ wwv_t
    wv_rep = wv.T @ jnp.ones((1, D), f32)    # [D, D], every column == wv row
    sum_d = jnp.ones((D, D), f32)            # segment-sum matrix

    # Block-diagonalize all [D, D] operators to [L, L] (one block per packed element).
    eye_p = jnp.eye(pack, dtype=f32)
    w_stack = jnp.stack(
        [jnp.kron(eye_p, m) for m in (sum_d, wt_t, wwu_t, wf_t, wv_rep)])   # [5, L, L]

    tile_l = lambda v: jnp.tile(v, pack)
    vecs = jnp.zeros((8, L), f32)
    vecs = (vecs.at[0].set(tile_l(gamma)).at[1].set(tile_l(beta))
                .at[2].set(tile_l(bt)).at[3].set(tile_l(bw))
                .at[4].set(tile_l(bf)).at[5].set(jnp.full((L,), bv[0], f32)))

    # ---- split uid / attribute rows in the wrapper and lane-pack them ----
    x = embeddings.astype(f32)
    uid = x[:, 0, :]                         # [B, D]
    iatt = x[:, 1:, :]                       # [B, N, D]
    if Bp != B:
        uid = jnp.pad(uid, ((0, Bp - B), (0, 0)))
        iatt = jnp.pad(iatt, ((0, Bp - B), (0, 0), (0, 0)))
    uid_p = uid.reshape(Bq_pad, L)                                        # pure reshape
    iatt_p = (iatt.reshape(Bq_pad, pack, N, D)
                  .transpose(0, 2, 1, 3)                                  # one-time relayout
                  .reshape(Bq_pad, N, L))

    # VMEM: double-buffered input block + ~8 block-sized f32 intermediates. Default
    # bb4=128 needs < 16 MiB on every chip (v7x: 64 MiB phys / 32 MiB scoped default);
    # raise block_b (and this limit) on v5e/v6e with their 128 MiB VMEM if desired.
    vmem_limit = int(min(max(16 << 20, 16 * bb4 * (N + 1) * L * 4), 32 << 20))

    grid_spec = pltpu.PrefetchScalarGridSpec(
        num_scalar_prefetch=0,
        grid=(n_blocks,),
        in_specs=[
            pl.BlockSpec((bb4, L), lambda b: (b, 0)),          # packed user rows
            pl.BlockSpec((bb4, N, L), lambda b: (b, 0, 0)),    # packed attribute rows
            pl.BlockSpec((8, L), lambda b: (0, 0)),            # packed small vectors
            pl.BlockSpec((5, L, L), lambda b: (0, 0, 0)),      # block-diag weight stack
        ],
        out_specs=pl.BlockSpec((bb4, L), lambda b: (b, 0)),    # lane-dense output slab
    )

    out_p = pl.pallas_call(
        functools.partial(att1_kernel, inv_d=1.0 / D),
        out_shape=jax.ShapeDtypeStruct((Bq_pad, L), f32),
        grid_spec=grid_spec,
        compiler_params=pltpu.CompilerParams(
            dimension_semantics=("parallel",),
            vmem_limit_bytes=vmem_limit,
        ),
    )(uid_p, iatt_p, vecs, w_stack)

    out = out_p.reshape(Bp, D)[:B]           # un-pack (pure reshape) + drop padding
    return out.astype(embeddings.dtype)


def att1_reference(x, params):
    """Pure-JAX reference of the same forward semantics (batched, torch-convention params)."""
    gamma, beta = params["gamma"], params["beta"]

    def ln(v):
        mean = v.mean(-1, keepdims=True)
        var = ((v - mean) ** 2).mean(-1, keepdims=True)
        return (v - mean) / jnp.sqrt(var + EPS) * gamma + beta

    xn = ln(x)
    uid = xn[:, 0:1, :]
    iatt = xn[:, 1:, :]
    value = iatt @ params["wt"].T + params["bt"]                                 # trans Linear
    cat = jnp.concatenate([jnp.broadcast_to(uid, value.shape), value], axis=-1)  # [B, N, 2D]
    h = _leaky(cat @ params["ww"].T + params["bw"])
    sc = h @ params["wv"].T + params["bv"]                                       # [B, N, 1]
    alphas = jax.nn.softmax(sc, axis=-2)
    att_value = (alphas * ln(value)).sum(axis=-2)                                # [B, D]
    return _leaky(att_value)


if __name__ == "__main__":
    S, D = 9, 32          # user id + 8 attributes, em_dim=32
    key = jax.random.PRNGKey(0)
    k_x, k_x2, k_wt, k_bt, k_ww, k_bw, k_wv, k_bv = jax.random.split(key, 8)

    scale = 1.0 / np.sqrt(D)
    params = {
        "gamma": jnp.ones((D,), jnp.float32),                                 # LayerNorm weight
        "beta": jnp.zeros((D,), jnp.float32),                                 # LayerNorm bias
        "wt": scale * jax.random.normal(k_wt, (D, D), jnp.float32),           # trans Linear
        "bt": scale * jax.random.normal(k_bt, (D,), jnp.float32),
        "ww": scale * jax.random.normal(k_ww, (D, 2 * D), jnp.float32),       # att Linear (cat input)
        "bw": scale * jax.random.normal(k_bw, (D,), jnp.float32),
        "wv": scale * jax.random.normal(k_wv, (1, D), jnp.float32),           # score Linear
        "bv": scale * jax.random.normal(k_bv, (1,), jnp.float32),
    }

    # 1) multi-step grid + padded (ragged) tail block
    B1 = 40
    emb1 = jax.random.normal(k_x, (B1, S, D), dtype=jnp.float32)
    out1 = jax.block_until_ready(att1_forward(emb1, params, block_b=16))
    ref1 = att1_reference(emb1, params)
    assert out1.shape == (B1, D), out1.shape
    # tolerance 2e-3 to absorb the approx (EUP) reciprocal in the softmax denominator
    np.testing.assert_allclose(np.asarray(out1), np.asarray(ref1), rtol=2e-3, atol=2e-3)

    # 2) auto block size, single full-dim block (no padding)
    B2 = 24
    emb2 = jax.random.normal(k_x2, (B2, S, D), dtype=jnp.float32)
    out2 = jax.block_until_ready(att1_forward(emb2, params))
    ref2 = att1_reference(emb2, params)
    assert out2.shape == (B2, D), out2.shape
    np.testing.assert_allclose(np.asarray(out2), np.asarray(ref2), rtol=2e-3, atol=2e-3)

    print("KERNEL_OK")
</pallas_src>

<mosaic_0001>
module attributes {stable_mosaic.version = 11 : i64} {
  func.func @att1_kernel(%arg0: i32, %arg1: memref<8x128xf32, #tpu.memory_space<vmem>>, %arg2: memref<8x8x128xf32, #tpu.memory_space<vmem>>, %arg3: memref<8x128xf32, #tpu.memory_space<vmem>>, %arg4: memref<5x128x128xf32, #tpu.memory_space<vmem>>, %arg5: memref<8x128xf32, #tpu.memory_space<vmem>>) attributes {dimension_semantics = [#tpu.dimension_semantics<parallel>], iteration_bounds = array<i64: 2>, scalar_prefetch = 0 : i64, scratch_operands = 0 : i64, tpu.core_type = #tpu.core_type<tc>, window_params = [{transform_indices = @transform_0, window_bounds = array<i64: 8, 128>}, {transform_indices = @transform_1, window_bounds = array<i64: 8, 8, 128>}, {pipeline_mode = #tpu.pipeline_mode<synchronous>, transform_indices = @transform_2, window_bounds = array<i64: 8, 128>}, {pipeline_mode = #tpu.pipeline_mode<synchronous>, transform_indices = @transform_3, window_bounds = array<i64: 5, 128, 128>}, {transform_indices = @transform_4, window_bounds = array<i64: 8, 128>}]} {
    %c0 = arith.constant 0 : index
    %c0_0 = arith.constant 0 : index
    %0 = vector.load %arg3[%c0, %c0_0] : memref<8x128xf32, #tpu.memory_space<vmem>>, vector<8x128xf32>
    %1 = vector.extract_strided_slice %0 {offsets = [0, 0], sizes = [1, 128], strides = [1, 1]} : vector<8x128xf32> to vector<1x128xf32>
    %2 = vector.extract_strided_slice %0 {offsets = [1, 0], sizes = [1, 128], strides = [1, 1]} : vector<8x128xf32> to vector<1x128xf32>
    %3 = vector.extract_strided_slice %0 {offsets = [2, 0], sizes = [1, 128], strides = [1, 1]} : vector<8x128xf32> to vector<1x128xf32>
    %4 = vector.extract_strided_slice %0 {offsets = [3, 0], sizes = [1, 128], strides = [1, 1]} : vector<8x128xf32> to vector<1x128xf32>
    %5 = vector.extract_strided_slice %0 {offsets = [4, 0], sizes = [1, 128], strides = [1, 1]} : vector<8x128xf32> to vector<1x128xf32>
    %6 = vector.extract_strided_slice %0 {offsets = [5, 0], sizes = [1, 128], strides = [1, 1]} : vector<8x128xf32> to vector<1x128xf32>
    %c0_1 = arith.constant 0 : index
    %c0_2 = arith.constant 0 : index
    %c0_3 = arith.constant 0 : index
    %7 = vector.load %arg4[%c0_1, %c0_2, %c0_3] : memref<5x128x128xf32, #tpu.memory_space<vmem>>, vector<1x128x128xf32>
    %8 = vector.shape_cast %7 : vector<1x128x128xf32> to vector<128x128xf32>
    %c1 = arith.constant 1 : index
    %c0_4 = arith.constant 0 : index
    %c0_5 = arith.constant 0 : index
    %9 = vector.load %arg4[%c1, %c0_4, %c0_5] : memref<5x128x128xf32, #tpu.memory_space<vmem>>, vector<1x128x128xf32>
    %10 = vector.shape_cast %9 : vector<1x128x128xf32> to vector<128x128xf32>
    %c2 = arith.constant 2 : index
    %c0_6 = arith.constant 0 : index
    %c0_7 = arith.constant 0 : index
    %11 = vector.load %arg4[%c2, %c0_6, %c0_7] : memref<5x128x128xf32, #tpu.memory_space<vmem>>, vector<1x128x128xf32>
    %12 = vector.shape_cast %11 : vector<1x128x128xf32> to vector<128x128xf32>
    %c3 = arith.constant 3 : index
    %c0_8 = arith.constant 0 : index
    %c0_9 = arith.constant 0 : index
    %13 = vector.load %arg4[%c3, %c0_8, %c0_9] : memref<5x128x128xf32, #tpu.memory_space<vmem>>, vector<1x128x128xf32>
    %14 = vector.shape_cast %13 : vector<1x128x128xf32> to vector<128x128xf32>
    %c4 = arith.constant 4 : index
    %c0_10 = arith.constant 0 : index
    %c0_11 = arith.constant 0 : index
    %15 = vector.load %arg4[%c4, %c0_10, %c0_11] : memref<5x128x128xf32, #tpu.memory_space<vmem>>, vector<1x128x128xf32>
    %16 = vector.shape_cast %15 : vector<1x128x128xf32> to vector<128x128xf32>
    %c0_12 = arith.constant 0 : index
    %c0_13 = arith.constant 0 : index
    %17 = vector.load %arg1[%c0_12, %c0_13] : memref<8x128xf32, #tpu.memory_space<vmem>>, vector<8x128xf32>
    %cst = arith.constant dense<0.000000e+00> : vector<8x128xf32>
    %18 = tpu.matmul %17, %8, %cst {dimension_numbers = #tpu.dot_dimension_numbers<[1], [0], [0], [1], [0, 0, 1, 1], [], []>} : vector<8x128xf32>, vector<128x128xf32>, vector<8x128xf32> -> vector<8x128xf32>
    %19 = arith.mulf %17, %17 : vector<8x128xf32>
    %cst_14 = arith.constant dense<0.000000e+00> : vector<8x128xf32>
    %20 = tpu.matmul %19, %8, %cst_14 {dimension_numbers = #tpu.dot_dimension_numbers<[1], [0], [0], [1], [0, 0, 1, 1], [], []>} : vector<8x128xf32>, vector<128x128xf32>, vector<8x128xf32> -> vector<8x128xf32>
    %cst_15 = arith.constant 3.125000e-02 : f32
    %21 = vector.broadcast %cst_15 : f32 to vector<8x128xf32>
    %22 = arith.mulf %18, %21 : vector<8x128xf32>
    %cst_16 = arith.constant 3.125000e-02 : f32
    %23 = vector.broadcast %cst_16 : f32 to vector<8x128xf32>
    %24 = arith.mulf %20, %23 : vector<8x128xf32>
    %25 = arith.mulf %22, %22 : vector<8x128xf32>
    %26 = arith.subf %24, %25 : vector<8x128xf32>
    %27 = arith.subf %17, %22 : vector<8x128xf32>
    %cst_17 = arith.constant 9.99999974E-6 : f32
    %28 = vector.broadcast %cst_17 : f32 to vector<8x128xf32>
    %29 = arith.addf %26, %28 : vector<8x128xf32>
    %30 = math.rsqrt %29 : vector<8x128xf32>
    %31 = arith.mulf %27, %30 : vector<8x128xf32>
    %32 = vector.broadcast %1 : vector<1x128xf32> to vector<8x128xf32>
    %33 = arith.mulf %31, %32 : vector<8x128xf32>
    %34 = vector.broadcast %2 : vector<1x128xf32> to vector<8x128xf32>
    %35 = arith.addf %33, %34 : vector<8x128xf32>
    %c0_18 = arith.constant 0 : index
    %c0_19 = arith.constant 0 : index
    %c0_20 = arith.constant 0 : index
    %36 = vector.load %arg2[%c0_18, %c0_19, %c0_20] : memref<8x8x128xf32, #tpu.memory_space<vmem>>, vector<8x8x128xf32>
    %37 = vector.shape_cast %36 : vector<8x8x128xf32> to vector<64x128xf32>
    %cst_21 = arith.constant dense<0.000000e+00> : vector<64x128xf32>
    %38 = tpu.matmul %37, %8, %cst_21 {dimension_numbers = #tpu.dot_dimension_numbers<[1], [0], [0], [1], [0, 0, 1, 1], [], []>} : vector<64x128xf32>, vector<128x128xf32>, vector<64x128xf32> -> vector<64x128xf32>
    %39 = arith.mulf %37, %37 : vector<64x128xf32>
    %cst_22 = arith.constant dense<0.000000e+00> : vector<64x128xf32>
    %40 = tpu.matmul %39, %8, %cst_22 {dimension_numbers = #tpu.dot_dimension_numbers<[1], [0], [0], [1], [0, 0, 1, 1], [], []>} : vector<64x128xf32>, vector<128x128xf32>, vector<64x128xf32> -> vector<64x128xf32>
    %cst_23 = arith.constant 3.125000e-02 : f32
    %41 = vector.broadcast %cst_23 : f32 to vector<64x128xf32>
    %42 = arith.mulf %38, %41 : vector<64x128xf32>
    %cst_24 = arith.constant 3.125000e-02 : f32
    %43 = vector.broadcast %cst_24 : f32 to vector<64x128xf32>
    %44 = arith.mulf %40, %43 : vector<64x128xf32>
    %45 = arith.mulf %42, %42 : vector<64x128xf32>
    %46 = arith.subf %44, %45 : vector<64x128xf32>
    %47 = arith.subf %37, %42 : vector<64x128xf32>
    %cst_25 = arith.constant 9.99999974E-6 : f32
    %48 = vector.broadcast %cst_25 : f32 to vector<64x128xf32>
    %49 = arith.addf %46, %48 : vector<64x128xf32>
    %50 = math.rsqrt %49 : vector<64x128xf32>
    %51 = arith.mulf %47, %50 : vector<64x128xf32>
    %52 = vector.broadcast %1 : vector<1x128xf32> to vector<64x128xf32>
    %53 = arith.mulf %51, %52 : vector<64x128xf32>
    %54 = vector.broadcast %2 : vector<1x128xf32> to vector<64x128xf32>
    %55 = arith.addf %53, %54 : vector<64x128xf32>
    %cst_26 = arith.constant dense<0.000000e+00> : vector<64x128xf32>
    %56 = tpu.matmul %55, %10, %cst_26 {dimension_numbers = #tpu.dot_dimension_numbers<[1], [0], [0], [1], [0, 0, 1, 1], [], []>} : vector<64x128xf32>, vector<128x128xf32>, vector<64x128xf32> -> vector<64x128xf32>
    %57 = vector.broadcast %3 : vector<1x128xf32> to vector<64x128xf32>
    %58 = arith.addf %56, %57 : vector<64x128xf32>
    %cst_27 = arith.constant dense<0.000000e+00> : vector<64x128xf32>
    %59 = tpu.matmul %55, %14, %cst_27 {dimension_numbers = #tpu.dot_dimension_numbers<[1], [0], [0], [1], [0, 0, 1, 1], [], []>} : vector<64x128xf32>, vector<128x128xf32>, vector<64x128xf32> -> vector<64x128xf32>
    %60 = vector.broadcast %5 : vector<1x128xf32> to vector<64x128xf32>
    %61 = arith.addf %59, %60 : vector<64x128xf32>
    %cst_28 = arith.constant dense<0.000000e+00> : vector<8x128xf32>
    %62 = tpu.matmul %35, %12, %cst_28 {dimension_numbers = #tpu.dot_dimension_numbers<[1], [0], [0], [1], [0, 0, 1, 1], [], []>} : vector<8x128xf32>, vector<128x128xf32>, vector<8x128xf32> -> vector<8x128xf32>
    %63 = vector.shape_cast %61 : vector<64x128xf32> to vector<8x8x128xf32>
    %64 = vector.shape_cast %62 : vector<8x128xf32> to vector<8x1x128xf32>
    %65 = vector.broadcast %64 : vector<8x1x128xf32> to vector<8x8x128xf32>
    %66 = arith.addf %63, %65 : vector<8x8x128xf32>
    %67 = vector.shape_cast %4 : vector<1x128xf32> to vector<1x1x128xf32>
    %68 = vector.broadcast %67 : vector<1x1x128xf32> to vector<8x8x128xf32>
    %69 = arith.addf %66, %68 : vector<8x8x128xf32>
    %cst_29 = arith.constant 0.000000e+00 : f32
    %70 = vector.broadcast %cst_29 : f32 to vector<8x8x128xf32>
    %71 = arith.cmpf oge, %69, %70 : vector<8x8x128xf32>
    %cst_30 = arith.constant 0.00999999977 : f32
    %72 = vector.broadcast %cst_30 : f32 to vector<8x8x128xf32>
    %73 = arith.mulf %72, %69 : vector<8x8x128xf32>
    %74 = arith.select %71, %69, %73 : vector<8x8x128xi1>, vector<8x8x128xf32>
    %75 = vector.shape_cast %74 : vector<8x8x128xf32> to vector<64x128xf32>
    %cst_31 = arith.constant dense<0.000000e+00> : vector<64x128xf32>
    %76 = tpu.matmul %75, %16, %cst_31 {dimension_numbers = #tpu.dot_dimension_numbers<[1], [0], [0], [1], [0, 0, 1, 1], [], []>} : vector<64x128xf32>, vector<128x128xf32>, vector<64x128xf32> -> vector<64x128xf32>
    %77 = vector.shape_cast %76 : vector<64x128xf32> to vector<8x8x128xf32>
    %78 = vector.shape_cast %6 : vector<1x128xf32> to vector<1x1x128xf32>
    %79 = vector.broadcast %78 : vector<1x1x128xf32> to vector<8x8x128xf32>
    %80 = arith.addf %77, %79 : vector<8x8x128xf32>
    %cst_32 = arith.constant dense<0xFF800000> : vector<8x128xf32>
    %81 = vector.multi_reduction <maximumf>, %80, %cst_32 [1] : vector<8x8x128xf32> to vector<8x128xf32>
    %82 = vector.shape_cast %81 : vector<8x128xf32> to vector<8x1x128xf32>
    %83 = vector.broadcast %82 : vector<8x1x128xf32> to vector<8x8x128xf32>
    %84 = arith.subf %80, %83 : vector<8x8x128xf32>
    %85 = math.exp %84 : vector<8x8x128xf32>
    %cst_33 = arith.constant dense<0.000000e+00> : vector<8x128xf32>
    %86 = vector.multi_reduction <add>, %85, %cst_33 [1] : vector<8x8x128xf32> to vector<8x128xf32>
    %87 = vector.shape_cast %86 : vector<8x128xf32> to vector<8x1x128xf32>
    %88 = tpu.reciprocal %87 {approx = true} : vector<8x1x128xf32> -> vector<8x1x128xf32>
    %89 = vector.broadcast %88 : vector<8x1x128xf32> to vector<8x8x128xf32>
    %90 = arith.mulf %85, %89 : vector<8x8x128xf32>
    %cst_34 = arith.constant dense<0.000000e+00> : vector<64x128xf32>
    %91 = tpu.matmul %58, %8, %cst_34 {dimension_numbers = #tpu.dot_dimension_numbers<[1], [0], [0], [1], [0, 0, 1, 1], [], []>} : vector<64x128xf32>, vector<128x128xf32>, vector<64x128xf32> -> vector<64x128xf32>
    %92 = arith.mulf %58, %58 : vector<64x128xf32>
    %cst_35 = arith.constant dense<0.000000e+00> : vector<64x128xf32>
    %93 = tpu.matmul %92, %8, %cst_35 {dimension_numbers = #tpu.dot_dimension_numbers<[1], [0], [0], [1], [0, 0, 1, 1], [], []>} : vector<64x128xf32>, vector<128x128xf32>, vector<64x128xf32> -> vector<64x128xf32>
    %cst_36 = arith.constant 3.125000e-02 : f32
    %94 = vector.broadcast %cst_36 : f32 to vector<64x128xf32>
    %95 = arith.mulf %91, %94 : vector<64x128xf32>
    %cst_37 = arith.constant 3.125000e-02 : f32
    %96 = vector.broadcast %cst_37 : f32 to vector<64x128xf32>
    %97 = arith.mulf %93, %96 : vector<64x128xf32>
    %98 = arith.mulf %95, %95 : vector<64x128xf32>
    %99 = arith.subf %97, %98 : vector<64x128xf32>
    %100 = arith.subf %58, %95 : vector<64x128xf32>
    %cst_38 = arith.constant 9.99999974E-6 : f32
    %101 = vector.broadcast %cst_38 : f32 to vector<64x128xf32>
    %102 = arith.addf %99, %101 : vector<64x128xf32>
    %103 = math.rsqrt %102 : vector<64x128xf32>
    %104 = arith.mulf %100, %103 : vector<64x128xf32>
    %105 = vector.broadcast %1 : vector<1x128xf32> to vector<64x128xf32>
    %106 = arith.mulf %104, %105 : vector<64x128xf32>
    %107 = vector.broadcast %2 : vector<1x128xf32> to vector<64x128xf32>
    %108 = arith.addf %106, %107 : vector<64x128xf32>
    %109 = vector.shape_cast %108 : vector<64x128xf32> to vector<8x8x128xf32>
    %110 = arith.mulf %90, %109 : vector<8x8x128xf32>
    %cst_39 = arith.constant dense<0.000000e+00> : vector<8x128xf32>
    %111 = vector.multi_reduction <add>, %110, %cst_39 [1] : vector<8x8x128xf32> to vector<8x128xf32>
    %cst_40 = arith.constant 0.000000e+00 : f32
    %112 = vector.broadcast %cst_40 : f32 to vector<8x128xf32>
    %113 = arith.cmpf oge, %111, %112 : vector<8x128xf32>
    %cst_41 = arith.constant 0.00999999977 : f32
    %114 = vector.broadcast %cst_41 : f32 to vector<8x128xf32>
    %115 = arith.mulf %114, %111 : vector<8x128xf32>
    %116 = arith.select %113, %111, %115 : vector<8x128xi1>, vector<8x128xf32>
    %c0_42 = arith.constant 0 : index
    %c0_43 = arith.constant 0 : index
    %117 = vector.load %arg5[%c0_42, %c0_43] : memref<8x128xf32, #tpu.memory_space<vmem>>, vector<8x128xf32>
    tpu.vector_store %arg5[%c0_42, %c0_43], %116 {strides = array<i32>} : memref<8x128xf32, #tpu.memory_space<vmem>>, vector<8x128xf32>,
    return
  }
  func.func @transform_0(%arg0: i32) -> (i32, i32) {
    %c0_i32 = arith.constant 0 : i32
    %c0_i32_0 = arith.constant 0 : i32
    return %arg0, %c0_i32 : i32, i32
  }
  func.func @transform_1(%arg0: i32) -> (i32, i32, i32) {
    %c0_i32 = arith.constant 0 : i32
    %c0_i32_0 = arith.constant 0 : i32
    %c0_i32_1 = arith.constant 0 : i32
    return %arg0, %c0_i32, %c0_i32_0 : i32, i32, i32
  }
  func.func @transform_2(%arg0: i32) -> (i32, i32) {
    %c0_i32 = arith.constant 0 : i32
    %c0_i32_0 = arith.constant 0 : i32
    %c0_i32_1 = arith.constant 0 : i32
    return %c0_i32, %c0_i32_0 : i32, i32
  }
  func.func @transform_3(%arg0: i32) -> (i32, i32, i32) {
    %c0_i32 = arith.constant 0 : i32
    %c0_i32_0 = arith.constant 0 : i32
    %c0_i32_1 = arith.constant 0 : i32
    %c0_i32_2 = arith.constant 0 : i32
    return %c0_i32, %c0_i32_0, %c0_i32_1 : i32, i32, i32
  }
  func.func @transform_4(%arg0: i32) -> (i32, i32) {
    %c0_i32 = arith.constant 0 : i32
    %c0_i32_0 = arith.constant 0 : i32
    return %arg0, %c0_i32 : i32, i32
  }
}

</mosaic_0001>

<llo_original>
// kernel: tpu_custom_call.1
$region0: #{tpu_custom_call.1}
  #allocation0 [shape = 'u32[]', space=smem, size = 0x4, offset = 0x4, fixed_abs, tag = 'smem constant byte address 0x4 - core index']
  #allocation1 [shape = 'u32[72,128]{1,0:T(1,128)}', space=vmem, size = 0x9000, scoped, tag = 'internal scratch']
  %s0 = inlined_call_operand.hbm [shape: f32[16,128], index: 0, kind: input, shape index: {}]
  %s1 = inlined_call_operand.hbm [shape: f32[16,8,128], index: 1, kind: input, shape index: {}]
  %s2 = inlined_call_operand.hbm [shape: f32[8,128], index: 2, kind: input, shape index: {}]
  %s3 = inlined_call_operand.hbm [shape: f32[5,128,128], index: 3, kind: input, shape index: {}]
  %s4 = inlined_call_operand.hbm [shape: f32[16,128], index: 4, kind: output, shape index: {}]
  %s5 = sld [smem:[#allocation0]]
  $region65: #{tpu_custom_call.1} parent=0
    _
  %s7 = ssub.s32 1, %s5
  %s8 = scalar_select 0, %s7, %s5
  $region1: #{tpu_custom_call.1} parent=0
    #allocation2 [shape = 'u8[8192]{0}', space=vmem, size = 0x2000, scoped, tag = 'input window, operand 0']
    #allocation3 [shape = 's32[2]{0}', space=sflag, size = 0x8, scoped, tag = 'scoped memory for tpu_custom_call.1']
    #allocation4 [shape = 's32[2]{0}', space=sflag, size = 0x8, scoped, tag = 'scoped memory for tpu_custom_call.1']
    #allocation5 [shape = 'u8[65536]{0}', space=vmem, size = 0x10000, scoped, tag = 'input window, operand 1']
    #allocation6 [shape = 's32[2]{0}', space=sflag, size = 0x8, scoped, tag = 'scoped memory for tpu_custom_call.1']
    #allocation7 [shape = 'u8[4096]{0}', space=vmem, size = 0x1000, scoped, tag = 'input window, operand 2, single buffered']
    #allocation8 [shape = 'u8[327680]{0}', space=vmem, size = 0x50000, scoped, tag = 'input window, operand 3, single buffered']
    #allocation9 [shape = 's32[1]{0}', space=sflag, size = 0x4, scoped, tag = 'scoped memory for tpu_custom_call.1']
    #allocation10 [shape = 'u8[8192]{0}', space=vmem, size = 0x2000, scoped, tag = 'output window, operand 0']
    %9 = vsyncpa [#allocation3], 0
    %s10 = scalar_lea.sflag [#allocation3], 1
    %11 = vsyncpa %s10, 0
    %12 = vsyncpa [#allocation6], 0
    %s13 = scalar_lea.sflag [#allocation6], 1
    %14 = vsyncpa %s13, 0
    %15 = vsyncpa [#allocation9], 0
    %16 = vsyncpa [#allocation4], 0
    %s17 = scalar_lea.sflag [#allocation4], 1
    %18 = vsyncpa %s17, 0
    loop: start=0, step=1, limit=4
    $region2: #{tpu_custom_call.1} parent=1 // loop_pre_header
      _
    $region3: #{tpu_custom_call.1} parent=1 // loop_header
      %s20 = sphi 0, %s24
      %p21 = scmp.ge.s32.totalorder %s20, 4
      %s30 = sphi 0, %s32
      %s33 = sphi 0, %s30
      %s34 = sphi 0, %s33
      %s50 = sphi 0, %s34
      %s56 = sphi 0, %s58
      %s59 = sphi 0, %s56
      %s60 = sphi 0, %s59
      %s76 = sphi 0, %s60
      %s80 = sphi 0, %s80
      %s82 = sphi 0, %s80
      %s83 = sphi 0, %s82
      %s97 = sphi 0, %s83
      %s101 = sphi 0, %s101
      %s103 = sphi 0, %s101
      %s104 = sphi 0, %s103
      %s118 = sphi 0, %s104
      %s124 = sphi 0, %s126
      %s127 = sphi 0, %s124
      %s128 = sphi 0, %s127
      %s144 = sphi 0, %s128
    $region4: #{tpu_custom_call.1} parent=1 // loop_header_branch
      %23 = sbr.rel (%p21) target = $region8
    $region5: #{tpu_custom_call.1} parent=1 // loop_body
      %s25 = ssub.s32 %s20, 1
      %s26 = ssub.s32 %s20, 2
      %s27 = sadd.s32 %s20, 1
      %s28 = ssub.s32 %s20, %s27
      %p29 = scmp.eq.s32.totalorder %s28, 0
      %s31 = sadd.s32 %s30, 1
      %s32 = scalar_select %p29, %s30, %s31
      %p35 = pneg %p29
      %p36 = scmp.eq.s32.totalorder %s20, 1
      %p37 = por %p35, %p36
      %p38 = scmp.ne.s32.totalorder %s30, %s33
      %p39 = scmp.eq.s32.totalorder %s20, 0
      %p40 = por %p38, %p39
      %p41 = scmp.ne.s32.totalorder %s30, %s33
      %p42 = scmp.eq.s32.totalorder %s25, 1
      %p43 = por %p41, %p42
      %p44 = scmp.ne.s32.totalorder %s33, %s34
      %p45 = scmp.eq.s32.totalorder %s25, 0
      %p46 = por %p44, %p45
      %p47 = scmp.ne.s32.totalorder %s33, %s34
      %p48 = scmp.eq.s32.totalorder %s26, 1
      %p49 = por %p47, %p48
      %p51 = scmp.ne.s32.totalorder %s34, %s50
      %p52 = scmp.eq.s32.totalorder %s26, 0
      %p53 = por %p51, %p52
      %s54 = ssub.s32 %s20, %s27
      %p55 = scmp.eq.s32.totalorder %s54, 0
      %s57 = sadd.s32 %s56, 1
      %s58 = scalar_select %p55, %s56, %s57
      %p61 = pneg %p55
      %p62 = scmp.eq.s32.totalorder %s20, 1
      %p63 = por %p61, %p62
      %p64 = scmp.ne.s32.totalorder %s56, %s59
      %p65 = scmp.eq.s32.totalorder %s20, 0
      %p66 = por %p64, %p65
      %p67 = scmp.ne.s32.totalorder %s56, %s59
      %p68 = scmp.eq.s32.totalorder %s25, 1
      %p69 = por %p67, %p68
      %p70 = scmp.ne.s32.totalorder %s59, %s60
      %p71 = scmp.eq.s32.totalorder %s25, 0
      %p72 = por %p70, %p71
      %p73 = scmp.ne.s32.totalorder %s59, %s60
      %p74 = scmp.eq.s32.totalorder %s26, 1
      %p75 = por %p73, %p74
      %p77 = scmp.ne.s32.totalorder %s60, %s76
      %p78 = scmp.eq.s32.totalorder %s26, 0
      %p79 = por %p77, %p78
      %s81 = sadd.s32 %s80, 1
      %p84 = scmp.eq.s32.totalorder %s20, 1
      %p85 = scmp.ne.s32.totalorder %s80, %s82
      %p86 = scmp.eq.s32.totalorder %s20, 0
      %p87 = por %p85, %p86
      %p88 = scmp.ne.s32.totalorder %s80, %s82
      %p89 = scmp.eq.s32.totalorder %s25, 1
      %p90 = por %p88, %p89
      %p91 = scmp.ne.s32.totalorder %s82, %s83
      %p92 = scmp.eq.s32.totalorder %s25, 0
      %p93 = por %p91, %p92
      %p94 = scmp.ne.s32.totalorder %s82, %s83
      %p95 = scmp.eq.s32.totalorder %s26, 1
      %p96 = por %p94, %p95
      %p98 = scmp.ne.s32.totalorder %s83, %s97
      %p99 = scmp.eq.s32.totalorder %s26, 0
      %p100 = por %p98, %p99
      %s102 = sadd.s32 %s101, 1
      %p105 = scmp.eq.s32.totalorder %s20, 1
      %p106 = scmp.ne.s32.totalorder %s101, %s103
      %p107 = scmp.eq.s32.totalorder %s20, 0
      %p108 = por %p106, %p107
      %p109 = scmp.ne.s32.totalorder %s101, %s103
      %p110 = scmp.eq.s32.totalorder %s25, 1
      %p111 = por %p109, %p110
      %p112 = scmp.ne.s32.totalorder %s103, %s104
      %p113 = scmp.eq.s32.totalorder %s25, 0
      %p114 = por %p112, %p113
      %p115 = scmp.ne.s32.totalorder %s103, %s104
      %p116 = scmp.eq.s32.totalorder %s26, 1
      %p117 = por %p115, %p116
      %p119 = scmp.ne.s32.totalorder %s104, %s118
      %p120 = scmp.eq.s32.totalorder %s26, 0
      %p121 = por %p119, %p120
      %s122 = ssub.s32 %s20, %s27
      %p123 = scmp.eq.s32.totalorder %s122, 0
      %s125 = sadd.s32 %s124, 1
      %s126 = scalar_select %p123, %s124, %s125
      %p129 = pneg %p123
      %p130 = scmp.eq.s32.totalorder %s20, 1
      %p131 = por %p129, %p130
      %p132 = scmp.ne.s32.totalorder %s124, %s127
      %p133 = scmp.eq.s32.totalorder %s20, 0
      %p134 = por %p132, %p133
      %p135 = scmp.ne.s32.totalorder %s124, %s127
      %p136 = scmp.eq.s32.totalorder %s25, 1
      %p137 = por %p135, %p136
      %p138 = scmp.ne.s32.totalorder %s127, %s128
      %p139 = scmp.eq.s32.totalorder %s25, 0
      %p140 = por %p138, %p139
      %p141 = scmp.ne.s32.totalorder %s127, %s128
      %p142 = scmp.eq.s32.totalorder %s26, 1
      %p143 = por %p141, %p142
      %p145 = scmp.ne.s32.totalorder %s128, %s144
      %p146 = scmp.eq.s32.totalorder %s26, 0
      %p147 = por %p145, %p146
      %p148 = scmp.le.s32.totalorder 1, %s20
      %p149 = scmp.lt.s32.totalorder %s20, 3
      %p150 = pnand %p148, %p149
      %p151 = pneg %p150
      // Predicated region
      $region9: #{tpu_custom_call.1} parent=5 // pred_check
        _
      $region10: #{tpu_custom_call.1} parent=5 // pred_check_branch
        %153 = sbr.rel (%p150) target = $region12
      $region11: #{tpu_custom_call.1} parent=5 // pred_region
        %s154 = ssub.s32 %s20, 1
        // Predicated region
        $region13: #{tpu_custom_call.1} parent=11 // pred_check
          %p155 = pneg %p93
        $region14: #{tpu_custom_call.1} parent=11 // pred_check_branch
          %157 = sbr.rel (%p155) target = $region16
        $region15: #{tpu_custom_call.1} parent=11 // pred_region
          %159 = vsyncadd [#allocation6], 0
          %s161 = sshll.u32 %s2, 4
          %s162 = int_to_ptr.hbm [resolvable:$true] %s161
          %s163 = sshll.u32 [#allocation7], 4
          %s164 = int_to_ptr.vmem [resolvable:$true] %s163
          %166 = dma.hbm_to_vmem [thread:$0]  %s162, 128, %s164, [#allocation6]
        $region16: #{tpu_custom_call.1} parent=11 // pred_fallthru
          _
        // Predicated region
        $region17: #{tpu_custom_call.1} parent=11 // pred_check
          %p167 = pneg %p114
        $region18: #{tpu_custom_call.1} parent=11 // pred_check_branch
          %169 = sbr.rel (%p167) target = $region20
        $region19: #{tpu_custom_call.1} parent=11 // pred_region
          %171 = vsyncadd [#allocation9], 0
          %s172 = sshll.u32 %s3, 4
          %s173 = int_to_ptr.hbm [resolvable:$true] %s172
          %s174 = sshll.u32 [#allocation8], 4
          %s175 = int_to_ptr.vmem [resolvable:$true] %s174
          %180 = dma.hbm_to_vmem [thread:$0]  %s173, 10240, %s175, [#allocation9], 128, 128, 8
        $region20: #{tpu_custom_call.1} parent=11 // pred_fallthru
          _
      $region12: #{tpu_custom_call.1} parent=5 // pred_fallthru
        _
      %p181 = scmp.lt.s32.totalorder %s20, 2
      // Predicated region
      $region21: #{tpu_custom_call.1} parent=5 // pred_check
        %p182 = pneg %p181
      $region22: #{tpu_custom_call.1} parent=5 // pred_check_branch
        %184 = sbr.rel (%p182) target = $region24
      $region23: #{tpu_custom_call.1} parent=5 // pred_region
        // Predicated region
        $region25: #{tpu_custom_call.1} parent=23 // pred_check
          %p185 = pneg %p40
        $region26: #{tpu_custom_call.1} parent=23 // pred_check_branch
          %187 = sbr.rel (%p185) target = $region28
        $region27: #{tpu_custom_call.1} parent=23 // pred_region
          %s188 = sand.u32 %s30, 1
          %s189 = scalar_lea.sflag [#allocation3], %s188
          %s190 = sand.u32 %s30, 1
          %s191 = smul.addr %s190, 8
          %s192 = scalar_lea.vmem [#allocation2], %s191
          %194 = vsyncadd %s189, 0
          %s195 = smul.addr %s20, 8
          %s196 = scalar_lea.hbm %s0, %s195
          %s198 = sshll.u32 %s196, 4
          %s199 = int_to_ptr.hbm [resolvable:$true] %s198
          %s200 = sshll.u32 %s192, 4
          %s201 = int_to_ptr.vmem [resolvable:$true] %s200
          %203 = dma.hbm_to_vmem [thread:$0]  %s199, 128, %s201, %s189
        $region28: #{tpu_custom_call.1} parent=23 // pred_fallthru
          _
        // Predicated region
        $region29: #{tpu_custom_call.1} parent=23 // pred_check
          %p204 = pneg %p66
        $region30: #{tpu_custom_call.1} parent=23 // pred_check_branch
          %206 = sbr.rel (%p204) target = $region32
        $region31: #{tpu_custom_call.1} parent=23 // pred_region
          %s207 = sand.u32 %s20, 1
          %s208 = scalar_lea.sflag [#allocation6], %s207
          %s209 = sand.u32 %s56, 1
          %s210 = smul.addr %s209, 64
          %s211 = scalar_lea.vmem [#allocation5], %s210
          %s212 = smul.u32 8, %s20
          %214 = vsyncadd %s208, 0
          %s215 = smul.addr %s212, 8
          %s216 = scalar_lea.hbm %s1, %s215
          %s217 = sshll.u32 %s216, 4
          %s218 = int_to_ptr.hbm [resolvable:$true] %s217
          %s219 = sshll.u32 %s211, 4
          %s220 = int_to_ptr.vmem [resolvable:$true] %s219
          %225 = dma.hbm_to_vmem [thread:$0]  %s218, 1024, %s220, %s208, 128, 128, 8
        $region32: #{tpu_custom_call.1} parent=23 // pred_fallthru
          _
      $region24: #{tpu_custom_call.1} parent=5 // pred_fallthru
        _
      %p226 = scmp.le.s32.totalorder 1, %s20
      %p227 = scmp.lt.s32.totalorder %s20, 3
      %p228 = pnand %p226, %p227
      %p229 = pneg %p228
      // Predicated region
      $region33: #{tpu_custom_call.1} parent=5 // pred_check
        _
      $region34: #{tpu_custom_call.1} parent=5 // pred_check_branch
        %231 = sbr.rel (%p228) target = $region36
      $region35: #{tpu_custom_call.1} parent=5 // pred_region
        %s232 = ssub.s32 %s20, 1
        %s233 = sand.u32 %s33, 1
        %s234 = scalar_lea.sflag [#allocation3], %s233
        %s235 = sand.u32 %s33, 1
        %s236 = smul.addr %s235, 8
        %s237 = scalar_lea.vmem [#allocation2], %s236
        // Predicated region
        $region37: #{tpu_custom_call.1} parent=35 // pred_check
          %p238 = pneg %p46
        $region38: #{tpu_custom_call.1} parent=35 // pred_check_branch
          %240 = sbr.rel (%p238) target = $region40
        $region39: #{tpu_custom_call.1} parent=35 // pred_region
          %242 = dma.done %s234, 128
        $region40: #{tpu_custom_call.1} parent=35 // pred_fallthru
          _
        %s243 = sand.u32 %s25, 1
        %s244 = scalar_lea.sflag [#allocation6], %s243
        %s245 = sand.u32 %s59, 1
        %s246 = smul.addr %s245, 64
        %s247 = scalar_lea.vmem [#allocation5], %s246
        // Predicated region
        $region41: #{tpu_custom_call.1} parent=35 // pred_check
          %p248 = pneg %p72
        $region42: #{tpu_custom_call.1} parent=35 // pred_check_branch
          %250 = sbr.rel (%p248) target = $region44
        $region43: #{tpu_custom_call.1} parent=35 // pred_region
          %252 = dma.done %s244, 1024
        $region44: #{tpu_custom_call.1} parent=35 // pred_fallthru
          _
        // Predicated region
        $region45: #{tpu_custom_call.1} parent=35 // pred_check
          %p253 = pneg %p93
        $region46: #{tpu_custom_call.1} parent=35 // pred_check_branch
          %255 = sbr.rel (%p253) target = $region48
        $region47: #{tpu_custom_call.1} parent=35 // pred_region
          %257 = dma.done [#allocation6], 128
        $region48: #{tpu_custom_call.1} parent=35 // pred_fallthru
          _
        // Predicated region
        $region49: #{tpu_custom_call.1} parent=35 // pred_check
          %p258 = pneg %p114
        $region50: #{tpu_custom_call.1} parent=35 // pred_check_branch
          %260 = sbr.rel (%p258) target = $region52
        $region51: #{tpu_custom_call.1} parent=35 // pred_region
          %262 = dma.done [#allocation9], 10240
        $region52: #{tpu_custom_call.1} parent=35 // pred_fallthru
          _
        %s263 = sand.u32 %s33, 1
        %s264 = scalar_lea.sflag [#allocation3], %s263
        %s265 = sand.u32 %s33, 1
        %s266 = smul.addr %s265, 8
        %s267 = scalar_lea.vmem [#allocation2], %s266
        %p268 = pneg %p46
        %p269 = pneg %p43
        %s270 = sand.u32 %s25, 1
        %s271 = scalar_lea.sflag [#allocation6], %s270
        %s272 = sand.u32 %s59, 1
        %s273 = smul.addr %s272, 64
        %s274 = scalar_lea.vmem [#allocation5], %s273
        %p275 = pneg %p72
        %p276 = pneg %p69
        %p277 = pneg %p93
        %p278 = pneg %p90
        %p279 = pneg %p114
        %p280 = pneg %p111
        %p281 = pneg %p140
        %p282 = pneg %p137
        %s283 = sand.u32 %s127, 1
        %s284 = scalar_lea.sflag [#allocation4], %s283
        %s285 = sand.u32 %s127, 1
        %s286 = smul.addr %s285, 8
        %s287 = scalar_lea.vmem [#allocation10], %s286
        %s288 = smul.u32 8, %s25
        %v289 = vld [vmem:[#allocation7] sm:$0xff]
        %v290 = vld [vmem:[#allocation8] sm:$0xff]
        %v291 = vld [vmem:[#allocation8 + $0x8] sm:$0xff]
        %v292 = vld [vmem:[#allocation8 + $0x10] sm:$0xff]
        %v293 = vld [vmem:[#allocation8 + $0x18] sm:$0xff]
        %v294 = vld [vmem:[#allocation8 + $0x20] sm:$0xff]
        %v295 = vld [vmem:[#allocation8 + $0x28] sm:$0xff]
        %v296 = vld [vmem:[#allocation8 + $0x30] sm:$0xff]
        %v297 = vld [vmem:[#allocation8 + $0x38] sm:$0xff]
        %v298 = vld [vmem:[#allocation8 + $0x40] sm:$0xff]
        %v299 = vld [vmem:[#allocation8 + $0x48] sm:$0xff]
        %v300 = vld [vmem:[#allocation8 + $0x50] sm:$0xff]
        %v301 = vld [vmem:[#allocation8 + $0x58] sm:$0xff]
        %v302 = vld [vmem:[#allocation8 + $0x60] sm:$0xff]
        %v303 = vld [vmem:[#allocation8 + $0x68] sm:$0xff]
        %v304 = vld [vmem:[#allocation8 + $0x70] sm:$0xff]
        %v305 = vld [vmem:[#allocation8 + $0x78] sm:$0xff]
        %s306 = scalar_lea.vmem [#allocation8], 128
        %v307 = vld [vmem:[%s306] sm:$0xff]
        %v308 = vld [vmem:[%s306 + $0x8] sm:$0xff]
        %v309 = vld [vmem:[%s306 + $0x10] sm:$0xff]
        %v310 = vld [vmem:[%s306 + $0x18] sm:$0xff]
        %v311 = vld [vmem:[%s306 + $0x20] sm:$0xff]
        %v312 = vld [vmem:[%s306 + $0x28] sm:$0xff]
        %v313 = vld [vmem:[%s306 + $0x30] sm:$0xff]
        %v314 = vld [vmem:[%s306 + $0x38] sm:$0xff]
        %v315 = vld [vmem:[%s306 + $0x40] sm:$0xff]
        %v316 = vld [vmem:[%s306 + $0x48] sm:$0xff]
        %v317 = vld [vmem:[%s306 + $0x50] sm:$0xff]
        %v318 = vld [vmem:[%s306 + $0x58] sm:$0xff]
        %v319 = vld [vmem:[%s306 + $0x60] sm:$0xff]
        %v320 = vld [vmem:[%s306 + $0x68] sm:$0xff]
        %v321 = vld [vmem:[%s306 + $0x70] sm:$0xff]
        %v322 = vld [vmem:[%s306 + $0x78] sm:$0xff]
        %s323 = scalar_lea.vmem [#allocation8], 256
        %v324 = vld [vmem:[%s323] sm:$0xff]
        %v325 = vld [vmem:[%s323 + $0x8] sm:$0xff]
        %v326 = vld [vmem:[%s323 + $0x10] sm:$0xff]
        %v327 = vld [vmem:[%s323 + $0x18] sm:$0xff]
        %v328 = vld [vmem:[%s323 + $0x20] sm:$0xff]
        %v329 = vld [vmem:[%s323 + $0x28] sm:$0xff]
        %v330 = vld [vmem:[%s323 + $0x30] sm:$0xff]
        %v331 = vld [vmem:[%s323 + $0x38] sm:$0xff]
        %v332 = vld [vmem:[%s323 + $0x40] sm:$0xff]
        %v333 = vld [vmem:[%s323 + $0x48] sm:$0xff]
        %v334 = vld [vmem:[%s323 + $0x50] sm:$0xff]
        %v335 = vld [vmem:[%s323 + $0x58] sm:$0xff]
        %v336 = vld [vmem:[%s323 + $0x60] sm:$0xff]
        %v337 = vld [vmem:[%s323 + $0x68] sm:$0xff]
        %v338 = vld [vmem:[%s323 + $0x70] sm:$0xff]
        %v339 = vld [vmem:[%s323 + $0x78] sm:$0xff]
        %s340 = scalar_lea.vmem [#allocation8], 384
        %v341 = vld [vmem:[%s340] sm:$0xff]
        %v342 = vld [vmem:[%s340 + $0x8] sm:$0xff]
        %v343 = vld [vmem:[%s340 + $0x10] sm:$0xff]
        %v344 = vld [vmem:[%s340 + $0x18] sm:$0xff]
        %v345 = vld [vmem:[%s340 + $0x20] sm:$0xff]
        %v346 = vld [vmem:[%s340 + $0x28] sm:$0xff]
        %v347 = vld [vmem:[%s340 + $0x30] sm:$0xff]
        %v348 = vld [vmem:[%s340 + $0x38] sm:$0xff]
        %v349 = vld [vmem:[%s340 + $0x40] sm:$0xff]
        %v350 = vld [vmem:[%s340 + $0x48] sm:$0xff]
        %v351 = vld [vmem:[%s340 + $0x50] sm:$0xff]
        %v352 = vld [vmem:[%s340 + $0x58] sm:$0xff]
        %v353 = vld [vmem:[%s340 + $0x60] sm:$0xff]
        %v354 = vld [vmem:[%s340 + $0x68] sm:$0xff]
        %v355 = vld [vmem:[%s340 + $0x70] sm:$0xff]
        %v356 = vld [vmem:[%s340 + $0x78] sm:$0xff]
        %s357 = scalar_lea.vmem [#allocation8], 512
        %v358 = vld [vmem:[%s357] sm:$0xff]
        %v359 = vld [vmem:[%s357 + $0x8] sm:$0xff]
        %v360 = vld [vmem:[%s357 + $0x10] sm:$0xff]
        %v361 = vld [vmem:[%s357 + $0x18] sm:$0xff]
        %v362 = vld [vmem:[%s357 + $0x20] sm:$0xff]
        %v363 = vld [vmem:[%s357 + $0x28] sm:$0xff]
        %v364 = vld [vmem:[%s357 + $0x30] sm:$0xff]
        %v365 = vld [vmem:[%s357 + $0x38] sm:$0xff]
        %v366 = vld [vmem:[%s357 + $0x40] sm:$0xff]
        %v367 = vld [vmem:[%s357 + $0x48] sm:$0xff]
        %v368 = vld [vmem:[%s357 + $0x50] sm:$0xff]
        %v369 = vld [vmem:[%s357 + $0x58] sm:$0xff]
        %v370 = vld [vmem:[%s357 + $0x60] sm:$0xff]
        %v371 = vld [vmem:[%s357 + $0x68] sm:$0xff]
        %v372 = vld [vmem:[%s357 + $0x70] sm:$0xff]
        %v373 = vld [vmem:[%s357 + $0x78] sm:$0xff]
        %v374 = vld [vmem:[%s237] sm:$0xff]
        %375 = vmatpush.msra.mxu0 %v305
        %376 = vmatpush.msra.mxu0 %v304
        %377 = vmatpush.msra.mxu0 %v303
        %378 = vmatpush.msra.mxu0 %v302
        %379 = vmatpush.msra.mxu0 %v301
        %380 = vmatpush.msra.mxu0 %v300
        %381 = vmatpush.msra.mxu0 %v299
        %382 = vmatpush.msra.mxu0 %v298
        %383 = vmatpush.msra.mxu0 %v297
        %384 = vmatpush.msra.mxu0 %v296
        %385 = vmatpush.msra.mxu0 %v295
        %386 = vmatpush.msra.mxu0 %v294
        %387 = vmatpush.msra.mxu0 %v293
        %388 = vmatpush.msra.mxu0 %v292
        %389 = vmatpush.msra.mxu0 %v291
        %390 = vmatpush.msra.mxu0 %v290
        %391 = vmatmul.f32.gmra.mxu0 %v374
        %v392 = vpop.f32.mrf.mxu0
        %v393 = vadd.f32 0.0, %v392
        %394 = vdwg.mxu0
        %v395 = vmul.f32 %v374, %v374
        %396 = vmatpush.msra.mxu0 %v305
        %397 = vmatpush.msra.mxu0 %v304
        %398 = vmatpush.msra.mxu0 %v303
        %399 = vmatpush.msra.mxu0 %v302
        %400 = vmatpush.msra.mxu0 %v301
        %401 = vmatpush.msra.mxu0 %v300
        %402 = vmatpush.msra.mxu0 %v299
        %403 = vmatpush.msra.mxu0 %v298
        %404 = vmatpush.msra.mxu0 %v297
        %405 = vmatpush.msra.mxu0 %v296
        %406 = vmatpush.msra.mxu0 %v295
        %407 = vmatpush.msra.mxu0 %v294
        %408 = vmatpush.msra.mxu0 %v293
        %409 = vmatpush.msra.mxu0 %v292
        %410 = vmatpush.msra.mxu0 %v291
        %411 = vmatpush.msra.mxu0 %v290
        %412 = vmatmul.f32.gmra.mxu0 %v395
        %v413 = vpop.f32.mrf.mxu0
        %v414 = vadd.f32 0.0, %v413
        %415 = vdwg.mxu0
        %v416 = vmul.f32 %v393, 0.03125
        %v417 = vmul.f32 %v414, 0.03125
        %v418 = vmul.f32 %v416, %v416
        %v419 = vsub.f32 %v417, %v418
        %v420 = vsub.f32 %v374, %v416
        %v421 = vadd.f32 %v419, 1e-05
        %v422 = vrsqrt.pop %v421
        %v423 = vmul.f32 %v422, %v421
        %v424 = vmul.f32 %v423, %v422
        %v425 = vmul.f32 0.5, %v424
        %v426 = vsub.f32 1.5, %v425
        %v427 = vmul.f32 %v422, %v426
        %vm428 = vweird.f32 %v421
        %vm429 = vweird.f32 %v422
        %vm430 = vmor %vm428, %vm429
        %v431 = vsel %vm430, %v422, %v427
        %v432 = vmul.f32 %v420, %v431
        %v433 = vperm.slane %v289, 0
        %v434 = vmul.f32 %v432, %v433
        %v435 = vperm.slane %v289, 1
        %v436 = vadd.f32 %v434, %v435
        %v437 = vld [vmem:[%s247] sm:$0xff]
        %v438 = vld [vmem:[%s247 + $0x8] sm:$0xff]
        %v439 = vld [vmem:[%s247 + $0x10] sm:$0xff]
        %v440 = vld [vmem:[%s247 + $0x18] sm:$0xff]
        %v441 = vld [vmem:[%s247 + $0x20] sm:$0xff]
        %v442 = vld [vmem:[%s247 + $0x28] sm:$0xff]
        %v443 = vld [vmem:[%s247 + $0x30] sm:$0xff]
        %v444 = vld [vmem:[%s247 + $0x38] sm:$0xff]
        %445 = vmatpush.msra.mxu0 %v305
        %446 = vmatpush.msra.mxu0 %v304
        %447 = vmatpush.msra.mxu0 %v303
        %448 = vmatpush.msra.mxu0 %v302
        %449 = vmatpush.msra.mxu0 %v301
        %450 = vmatpush.msra.mxu0 %v300
        %451 = vmatpush.msra.mxu0 %v299
        %452 = vmatpush.msra.mxu0 %v298
        %453 = vmatpush.msra.mxu0 %v297
        %454 = vmatpush.msra.mxu0 %v296
        %455 = vmatpush.msra.mxu0 %v295
        %456 = vmatpush.msra.mxu0 %v294
        %457 = vmatpush.msra.mxu0 %v293
        %458 = vmatpush.msra.mxu0 %v292
        %459 = vmatpush.msra.mxu0 %v291
        %460 = vmatpush.msra.mxu0 %v290
        %461 = vmatmul.f32.gmra.mxu0 %v437
        %v462 = vpop.f32.mrf.mxu0
        %v463 = vadd.f32 0.0, %v462
        %464 = vmatmul.f32.gmra.mxu0 %v438
        %v465 = vpop.f32.mrf.mxu0
        %v466 = vadd.f32 0.0, %v465
        %467 = vmatmul.f32.gmra.mxu0 %v439
        %v468 = vpop.f32.mrf.mxu0
        %v469 = vadd.f32 0.0, %v468
        %470 = vmatmul.f32.gmra.mxu0 %v440
        %v471 = vpop.f32.mrf.mxu0
        %v472 = vadd.f32 0.0, %v471
        %473 = vmatmul.f32.gmra.mxu0 %v441
        %v474 = vpop.f32.mrf.mxu0
        %v475 = vadd.f32 0.0, %v474
        %476 = vmatmul.f32.gmra.mxu0 %v442
        %v477 = vpop.f32.mrf.mxu0
        %v478 = vadd.f32 0.0, %v477
        %479 = vmatmul.f32.gmra.mxu0 %v443
        %v480 = vpop.f32.mrf.mxu0
        %v481 = vadd.f32 0.0, %v480
        %482 = vmatmul.f32.gmra.mxu0 %v444
        %v483 = vpop.f32.mrf.mxu0
        %v484 = vadd.f32 0.0, %v483
        %485 = vdwg.mxu0
        %v486 = vmul.f32 %v437, %v437
        %v487 = vmul.f32 %v438, %v438
        %v488 = vmul.f32 %v439, %v439
        %v489 = vmul.f32 %v440, %v440
        %v490 = vmul.f32 %v441, %v441
        %v491 = vmul.f32 %v442, %v442
        %v492 = vmul.f32 %v443, %v443
        %v493 = vmul.f32 %v444, %v444
        %494 = vmatpush.msra.mxu0 %v305
        %495 = vmatpush.msra.mxu0 %v304
        %496 = vmatpush.msra.mxu0 %v303
        %497 = vmatpush.msra.mxu0 %v302
        %498 = vmatpush.msra.mxu0 %v301
        %499 = vmatpush.msra.mxu0 %v300
        %500 = vmatpush.msra.mxu0 %v299
        %501 = vmatpush.msra.mxu0 %v298
        %502 = vmatpush.msra.mxu0 %v297
        %503 = vmatpush.msra.mxu0 %v296
        %504 = vmatpush.msra.mxu0 %v295
        %505 = vmatpush.msra.mxu0 %v294
        %506 = vmatpush.msra.mxu0 %v293
        %507 = vmatpush.msra.mxu0 %v292
        %508 = vmatpush.msra.mxu0 %v291
        %509 = vmatpush.msra.mxu0 %v290
        %510 = vmatmul.f32.gmra.mxu0 %v486
        %v511 = vpop.f32.mrf.mxu0
        %v512 = vadd.f32 0.0, %v511
        %513 = vmatmul.f32.gmra.mxu0 %v487
        %v514 = vpop.f32.mrf.mxu0
        %v515 = vadd.f32 0.0, %v514
        %516 = vmatmul.f32.gmra.mxu0 %v488
        %v517 = vpop.f32.mrf.mxu0
        %v518 = vadd.f32 0.0, %v517
        %519 = vmatmul.f32.gmra.mxu0 %v489
        %v520 = vpop.f32.mrf.mxu0
        %v521 = vadd.f32 0.0, %v520
        %522 = vmatmul.f32.gmra.mxu0 %v490
        %v523 = vpop.f32.mrf.mxu0
        %v524 = vadd.f32 0.0, %v523
        %525 = vmatmul.f32.gmra.mxu0 %v491
        %v526 = vpop.f32.mrf.mxu0
        %v527 = vadd.f32 0.0, %v526
        %528 = vmatmul.f32.gmra.mxu0 %v492
        %v529 = vpop.f32.mrf.mxu0
        %v530 = vadd.f32 0.0, %v529
        %531 = vmatmul.f32.gmra.mxu0 %v493
        %v532 = vpop.f32.mrf.mxu0
        %v533 = vadd.f32 0.0, %v532
        %534 = vdwg.mxu0
        %v535 = vmul.f32 %v463, 0.03125
        %v536 = vmul.f32 %v466, 0.03125
        %v537 = vmul.f32 %v469, 0.03125
        %v538 = vmul.f32 %v472, 0.03125
        %v539 = vmul.f32 %v475, 0.03125
        %v540 = vmul.f32 %v478, 0.03125
        %v541 = vmul.f32 %v481, 0.03125
        %v542 = vmul.f32 %v484, 0.03125
        %v543 = vmul.f32 %v512, 0.03125
        %v544 = vmul.f32 %v515, 0.03125
        %v545 = vmul.f32 %v518, 0.03125
        %v546 = vmul.f32 %v521, 0.03125
        %v547 = vmul.f32 %v524, 0.03125
        %v548 = vmul.f32 %v527, 0.03125
        %v549 = vmul.f32 %v530, 0.03125
        %v550 = vmul.f32 %v533, 0.03125
        %v551 = vmul.f32 %v535, %v535
        %v552 = vmul.f32 %v536, %v536
        %v553 = vmul.f32 %v537, %v537
        %v554 = vmul.f32 %v538, %v538
        %v555 = vmul.f32 %v539, %v539
        %v556 = vmul.f32 %v540, %v540
        %v557 = vmul.f32 %v541, %v541
        %v558 = vmul.f32 %v542, %v542
        %v559 = vsub.f32 %v543, %v551
        %v560 = vsub.f32 %v544, %v552
        %v561 = vsub.f32 %v545, %v553
        %v562 = vsub.f32 %v546, %v554
        %v563 = vsub.f32 %v547, %v555
        %v564 = vsub.f32 %v548, %v556
        %v565 = vsub.f32 %v549, %v557
        %v566 = vsub.f32 %v550, %v558
        %v567 = vsub.f32 %v437, %v535
        %v568 = vsub.f32 %v438, %v536
        %v569 = vsub.f32 %v439, %v537
        %v570 = vsub.f32 %v440, %v538
        %v571 = vsub.f32 %v441, %v539
        %v572 = vsub.f32 %v442, %v540
        %v573 = vsub.f32 %v443, %v541
        %v574 = vsub.f32 %v444, %v542
        %v575 = vadd.f32 %v559, 1e-05
        %v576 = vadd.f32 %v560, 1e-05
        %v577 = vadd.f32 %v561, 1e-05
        %v578 = vadd.f32 %v562, 1e-05
        %v579 = vadd.f32 %v563, 1e-05
        %v580 = vadd.f32 %v564, 1e-05
        %v581 = vadd.f32 %v565, 1e-05
        %v582 = vadd.f32 %v566, 1e-05
        %v583 = vrsqrt.pop %v575
        %v584 = vmul.f32 %v583, %v575
        %v585 = vmul.f32 %v584, %v583
        %v586 = vmul.f32 0.5, %v585
        %v587 = vsub.f32 1.5, %v586
        %v588 = vmul.f32 %v583, %v587
        %vm589 = vweird.f32 %v575
        %vm590 = vweird.f32 %v583
        %vm591 = vmor %vm589, %vm590
        %v592 = vsel %vm591, %v583, %v588
        %v593 = vrsqrt.pop %v576
        %v594 = vmul.f32 %v593, %v576
        %v595 = vmul.f32 %v594, %v593
        %v596 = vmul.f32 0.5, %v595
        %v597 = vsub.f32 1.5, %v596
        %v598 = vmul.f32 %v593, %v597
        %vm599 = vweird.f32 %v576
        %vm600 = vweird.f32 %v593
        %vm601 = vmor %vm599, %vm600
        %v602 = vsel %vm601, %v593, %v598
        %v603 = vrsqrt.pop %v577
        %v604 = vmul.f32 %v603, %v577
        %v605 = vmul.f32 %v604, %v603
        %v606 = vmul.f32 0.5, %v605
        %v607 = vsub.f32 1.5, %v606
        %v608 = vmul.f32 %v603, %v607
        %vm609 = vweird.f32 %v577
        %vm610 = vweird.f32 %v603
        %vm611 = vmor %vm609, %vm610
        %v612 = vsel %vm611, %v603, %v608
        %v613 = vrsqrt.pop %v578
        %v614 = vmul.f32 %v613, %v578
        %v615 = vmul.f32 %v614, %v613
        %v616 = vmul.f32 0.5, %v615
        %v617 = vsub.f32 1.5, %v616
        %v618 = vmul.f32 %v613, %v617
        %vm619 = vweird.f32 %v578
        %vm620 = vweird.f32 %v613
        %vm621 = vmor %vm619, %vm620
        %v622 = vsel %vm621, %v613, %v618
        %v623 = vrsqrt.pop %v579
        %v624 = vmul.f32 %v623, %v579
        %v625 = vmul.f32 %v624, %v623
        %v626 = vmul.f32 0.5, %v625
        %v627 = vsub.f32 1.5, %v626
        %v628 = vmul.f32 %v623, %v627
        %vm629 = vweird.f32 %v579
        %vm630 = vweird.f32 %v623
        %vm631 = vmor %vm629, %vm630
        %v632 = vsel %vm631, %v623, %v628
        %v633 = vrsqrt.pop %v580
        %v634 = vmul.f32 %v633, %v580
        %v635 = vmul.f32 %v634, %v633
        %v636 = vmul.f32 0.5, %v635
        %v637 = vsub.f32 1.5, %v636
        %v638 = vmul.f32 %v633, %v637
        %vm639 = vweird.f32 %v580
        %vm640 = vweird.f32 %v633
        %vm641 = vmor %vm639, %vm640
        %v642 = vsel %vm641, %v633, %v638
        %v643 = vrsqrt.pop %v581
        %v644 = vmul.f32 %v643, %v581
        %v645 = vmul.f32 %v644, %v643
        %v646 = vmul.f32 0.5, %v645
        %v647 = vsub.f32 1.5, %v646
        %v648 = vmul.f32 %v643, %v647
        %vm649 = vweird.f32 %v581
        %vm650 = vweird.f32 %v643
        %vm651 = vmor %vm649, %vm650
        %v652 = vsel %vm651, %v643, %v648
        %v653 = vrsqrt.pop %v582
        %v654 = vmul.f32 %v653, %v582
        %v655 = vmul.f32 %v654, %v653
        %v656 = vmul.f32 0.5, %v655
        %v657 = vsub.f32 1.5, %v656
        %v658 = vmul.f32 %v653, %v657
        %vm659 = vweird.f32 %v582
        %vm660 = vweird.f32 %v653
        %vm661 = vmor %vm659, %vm660
        %v662 = vsel %vm661, %v653, %v658
        %v663 = vmul.f32 %v567, %v592
        %v664 = vmul.f32 %v568, %v602
        %v665 = vmul.f32 %v569, %v612
        %v666 = vmul.f32 %v570, %v622
        %v667 = vmul.f32 %v571, %v632
        %v668 = vmul.f32 %v572, %v642
        %v669 = vmul.f32 %v573, %v652
        %v670 = vmul.f32 %v574, %v662
        %v671 = vmul.f32 %v663, %v433
        %v672 = vmul.f32 %v664, %v433
        %v673 = vmul.f32 %v665, %v433
        %v674 = vmul.f32 %v666, %v433
        %v675 = vmul.f32 %v667, %v433
        %v676 = vmul.f32 %v668, %v433
        %v677 = vmul.f32 %v669, %v433
        %v678 = vmul.f32 %v670, %v433
        %v679 = vadd.f32 %v671, %v435
        %v680 = vadd.f32 %v672, %v435
        %v681 = vadd.f32 %v673, %v435
        %v682 = vadd.f32 %v674, %v435
        %v683 = vadd.f32 %v675, %v435
        %v684 = vadd.f32 %v676, %v435
        %v685 = vadd.f32 %v677, %v435
        %v686 = vadd.f32 %v678, %v435
        %v687 = vperm.slane %v289, 2
        %688 = vmatpush.msra.mxu0 %v322
        %689 = vmatpush.msra.mxu0 %v321
        %690 = vmatpush.msra.mxu0 %v320
        %691 = vmatpush.msra.mxu0 %v319
        %692 = vmatpush.msra.mxu0 %v318
        %693 = vmatpush.msra.mxu0 %v317
        %694 = vmatpush.msra.mxu0 %v316
        %695 = vmatpush.msra.mxu0 %v315
        %696 = vmatpush.msra.mxu0 %v314
        %697 = vmatpush.msra.mxu0 %v313
        %698 = vmatpush.msra.mxu0 %v312
        %699 = vmatpush.msra.mxu0 %v311
        %700 = vmatpush.msra.mxu0 %v310
        %701 = vmatpush.msra.mxu0 %v309
        %702 = vmatpush.msra.mxu0 %v308
        %703 = vmatpush.msra.mxu0 %v307
        %704 = vmatmul.f32.gmra.mxu0 %v679
        %v705 = vpop.f32.mrf.mxu0
        %v706 = vadd.f32 %v687, %v705
        %707 = vmatmul.f32.gmra.mxu0 %v680
        %v708 = vpop.f32.mrf.mxu0
        %v709 = vadd.f32 %v687, %v708
        %710 = vmatmul.f32.gmra.mxu0 %v681
        %v711 = vpop.f32.mrf.mxu0
        %v712 = vadd.f32 %v687, %v711
        %713 = vmatmul.f32.gmra.mxu0 %v682
        %v714 = vpop.f32.mrf.mxu0
        %v715 = vadd.f32 %v687, %v714
        %716 = vmatmul.f32.gmra.mxu0 %v683
        %v717 = vpop.f32.mrf.mxu0
        %v718 = vadd.f32 %v687, %v717
        %719 = vmatmul.f32.gmra.mxu0 %v684
        %v720 = vpop.f32.mrf.mxu0
        %v721 = vadd.f32 %v687, %v720
        %722 = vmatmul.f32.gmra.mxu0 %v685
        %v723 = vpop.f32.mrf.mxu0
        %v724 = vadd.f32 %v687, %v723
        %725 = vmatmul.f32.gmra.mxu0 %v686
        %v726 = vpop.f32.mrf.mxu0
        %v727 = vadd.f32 %v687, %v726
        %728 = vdwg.mxu0
        %v729 = vperm.slane %v289, 4
        %730 = vmatpush.msra.mxu0 %v356
        %731 = vmatpush.msra.mxu0 %v355
        %732 = vmatpush.msra.mxu0 %v354
        %733 = vmatpush.msra.mxu0 %v353
        %734 = vmatpush.msra.mxu0 %v352
        %735 = vmatpush.msra.mxu0 %v351
        %736 = vmatpush.msra.mxu0 %v350
        %737 = vmatpush.msra.mxu0 %v349
        %738 = vmatpush.msra.mxu0 %v348
        %739 = vmatpush.msra.mxu0 %v347
        %740 = vmatpush.msra.mxu0 %v346
        %741 = vmatpush.msra.mxu0 %v345
        %742 = vmatpush.msra.mxu0 %v344
        %743 = vmatpush.msra.mxu0 %v343
        %744 = vmatpush.msra.mxu0 %v342
        %745 = vmatpush.msra.mxu0 %v341
        %746 = vmatmul.f32.gmra.mxu0 %v679
        %v747 = vpop.f32.mrf.mxu0
        %v748 = vadd.f32 %v729, %v747
        %749 = vmatmul.f32.gmra.mxu0 %v680
        %v750 = vpop.f32.mrf.mxu0
        %v751 = vadd.f32 %v729, %v750
        %752 = vmatmul.f32.gmra.mxu0 %v681
        %v753 = vpop.f32.mrf.mxu0
        %v754 = vadd.f32 %v729, %v753
        %755 = vmatmul.f32.gmra.mxu0 %v682
        %v756 = vpop.f32.mrf.mxu0
        %v757 = vadd.f32 %v729, %v756
        %758 = vmatmul.f32.gmra.mxu0 %v683
        %v759 = vpop.f32.mrf.mxu0
        %v760 = vadd.f32 %v729, %v759
        %761 = vmatmul.f32.gmra.mxu0 %v684
        %v762 = vpop.f32.mrf.mxu0
        %v763 = vadd.f32 %v729, %v762
        %764 = vmatmul.f32.gmra.mxu0 %v685
        %v765 = vpop.f32.mrf.mxu0
        %v766 = vadd.f32 %v729, %v765
        %767 = vmatmul.f32.gmra.mxu0 %v686
        %v768 = vpop.f32.mrf.mxu0
        %v769 = vadd.f32 %v729, %v768
        %770 = vdwg.mxu0
        %771 = vmatpush.msra.mxu0 %v339
        %772 = vmatpush.msra.mxu0 %v338
        %773 = vmatpush.msra.mxu0 %v337
        %774 = vmatpush.msra.mxu0 %v336
        %775 = vmatpush.msra.mxu0 %v335
        %776 = vmatpush.msra.mxu0 %v334
        %777 = vmatpush.msra.mxu0 %v333
        %778 = vmatpush.msra.mxu0 %v332
        %779 = vmatpush.msra.mxu0 %v331
        %780 = vmatpush.msra.mxu0 %v330
        %781 = vmatpush.msra.mxu0 %v329
        %782 = vmatpush.msra.mxu0 %v328
        %783 = vmatpush.msra.mxu0 %v327
        %784 = vmatpush.msra.mxu0 %v326
        %785 = vmatpush.msra.mxu0 %v325
        %786 = vmatpush.msra.mxu0 %v324
        %787 = vmatmul.f32.gmra.mxu0 %v436
        %v788 = vpop.f32.mrf.mxu0
        %v789 = vadd.f32 0.0, %v788
        %790 = vdwg.mxu0
        %v792 = vrot.slane %v789, 1
        %v793 = vrot.slane %v789, 2
        %v794 = vrot.slane %v789, 3
        %v795 = vrot.slane %v789, 4
        %v796 = vrot.slane %v789, 5
        %v797 = vrot.slane %v789, 6
        %v798 = vrot.slane %v789, 7
        %v799 = vperm.slane %v789, 0
        %v800 = vperm.slane %v792, 0
        %v801 = vperm.slane %v793, 0
        %v802 = vperm.slane %v794, 0
        %v803 = vperm.slane %v795, 0
        %v804 = vperm.slane %v796, 0
        %v805 = vperm.slane %v797, 0
        %v806 = vperm.slane %v798, 0
        %v815 = vadd.f32 %v748, %v799
        %v816 = vadd.f32 %v751, %v800
        %v817 = vadd.f32 %v754, %v801
        %v818 = vadd.f32 %v757, %v802
        %v819 = vadd.f32 %v760, %v803
        %v820 = vadd.f32 %v763, %v804
        %v821 = vadd.f32 %v766, %v805
        %v822 = vadd.f32 %v769, %v806
        %v823 = vperm.slane %v289, 3
        %v824 = vadd.f32 %v815, %v823
        %v825 = vadd.f32 %v816, %v823
        %v826 = vadd.f32 %v817, %v823
        %v827 = vadd.f32 %v818, %v823
        %v828 = vadd.f32 %v819, %v823
        %v829 = vadd.f32 %v820, %v823
        %v830 = vadd.f32 %v821, %v823
        %v831 = vadd.f32 %v822, %v823
        %vm832 = vcmp.ge.f32.partialorder %v824, 0.0
        %vm833 = vcmp.ge.f32.partialorder %v825, 0.0
        %vm834 = vcmp.ge.f32.partialorder %v826, 0.0
        %vm835 = vcmp.ge.f32.partialorder %v827, 0.0
        %vm836 = vcmp.ge.f32.partialorder %v828, 0.0
        %vm837 = vcmp.ge.f32.partialorder %v829, 0.0
        %vm838 = vcmp.ge.f32.partialorder %v830, 0.0
        %vm839 = vcmp.ge.f32.partialorder %v831, 0.0
        %v840 = vmul.f32 %v824, 0.01
        %v841 = vmul.f32 %v825, 0.01
        %v842 = vmul.f32 %v826, 0.01
        %v843 = vmul.f32 %v827, 0.01
        %v844 = vmul.f32 %v828, 0.01
        %v845 = vmul.f32 %v829, 0.01
        %v846 = vmul.f32 %v830, 0.01
        %v847 = vmul.f32 %v831, 0.01
        %v848 = vsel %vm832, %v824, %v840
        %v849 = vsel %vm833, %v825, %v841
        %v850 = vsel %vm834, %v826, %v842
        %v851 = vsel %vm835, %v827, %v843
        %v852 = vsel %vm836, %v828, %v844
        %v853 = vsel %vm837, %v829, %v845
        %v854 = vsel %vm838, %v830, %v846
        %v855 = vsel %vm839, %v831, %v847
        %856 = vmatpush.msra.mxu0 %v373
        %857 = vmatpush.msra.mxu0 %v372
        %858 = vmatpush.msra.mxu0 %v371
        %859 = vmatpush.msra.mxu0 %v370
        %860 = vmatpush.msra.mxu0 %v369
        %861 = vmatpush.msra.mxu0 %v368
        %862 = vmatpush.msra.mxu0 %v367
        %863 = vmatpush.msra.mxu0 %v366
        %864 = vmatpush.msra.mxu0 %v365
        %865 = vmatpush.msra.mxu0 %v364
        %866 = vmatpush.msra.mxu0 %v363
        %867 = vmatpush.msra.mxu0 %v362
        %868 = vmatpush.msra.mxu0 %v361
        %869 = vmatpush.msra.mxu0 %v360
        %870 = vmatpush.msra.mxu0 %v359
        %871 = vmatpush.msra.mxu0 %v358
        %872 = vmatmul.f32.gmra.mxu0 %v848
        %v873 = vpop.f32.mrf.mxu0
        %v874 = vadd.f32 0.0, %v873
        %875 = vmatmul.f32.gmra.mxu0 %v849
        %v876 = vpop.f32.mrf.mxu0
        %v877 = vadd.f32 0.0, %v876
        %878 = vmatmul.f32.gmra.mxu0 %v850
        %v879 = vpop.f32.mrf.mxu0
        %v880 = vadd.f32 0.0, %v879
        %881 = vmatmul.f32.gmra.mxu0 %v851
        %v882 = vpop.f32.mrf.mxu0
        %v883 = vadd.f32 0.0, %v882
        %884 = vmatmul.f32.gmra.mxu0 %v852
        %v885 = vpop.f32.mrf.mxu0
        %v886 = vadd.f32 0.0, %v885
        %887 = vmatmul.f32.gmra.mxu0 %v853
        %v888 = vpop.f32.mrf.mxu0
        %v889 = vadd.f32 0.0, %v888
        %890 = vmatmul.f32.gmra.mxu0 %v854
        %v891 = vpop.f32.mrf.mxu0
        %v892 = vadd.f32 0.0, %v891
        %893 = vmatmul.f32.gmra.mxu0 %v855
        %v894 = vpop.f32.mrf.mxu0
        %v895 = vadd.f32 0.0, %v894
        %896 = vdwg.mxu0
        %v897 = vperm.slane %v289, 5
        %v898 = vadd.f32 %v874, %v897
        %v899 = vadd.f32 %v877, %v897
        %v900 = vadd.f32 %v880, %v897
        %v901 = vadd.f32 %v883, %v897
        %v902 = vadd.f32 %v886, %v897
        %v903 = vadd.f32 %v889, %v897
        %v904 = vadd.f32 %v892, %v897
        %v905 = vadd.f32 %v895, %v897
        %v906 = vrot.slane %v898, 4
        %v907 = vmax.f32 %v898, %v906
        %v908 = vrot.slane %v907, 2
        %v909 = vmax.f32 %v907, %v908
        %v910 = vrot.slane %v909, 1
        %v911 = vmax.f32 %v909, %v910
        %v912 = vrot.slane %v899, 4
        %v913 = vmax.f32 %v899, %v912
        %v914 = vrot.slane %v913, 2
        %v915 = vmax.f32 %v913, %v914
        %v916 = vrot.slane %v915, 1
        %v917 = vmax.f32 %v915, %v916
        %v918 = vrot.slane %v900, 4
        %v919 = vmax.f32 %v900, %v918
        %v920 = vrot.slane %v919, 2
        %v921 = vmax.f32 %v919, %v920
        %v922 = vrot.slane %v921, 1
        %v923 = vmax.f32 %v921, %v922
        %v924 = vrot.slane %v901, 4
        %v925 = vmax.f32 %v901, %v924
        %v926 = vrot.slane %v925, 2
        %v927 = vmax.f32 %v925, %v926
        %v928 = vrot.slane %v927, 1
        %v929 = vmax.f32 %v927, %v928
        %v930 = vrot.slane %v902, 4
        %v931 = vmax.f32 %v902, %v930
        %v932 = vrot.slane %v931, 2
        %v933 = vmax.f32 %v931, %v932
        %v934 = vrot.slane %v933, 1
        %v935 = vmax.f32 %v933, %v934
        %v936 = vrot.slane %v903, 4
        %v937 = vmax.f32 %v903, %v936
        %v938 = vrot.slane %v937, 2
        %v939 = vmax.f32 %v937, %v938
        %v940 = vrot.slane %v939, 1
        %v941 = vmax.f32 %v939, %v940
        %v942 = vrot.slane %v904, 4
        %v943 = vmax.f32 %v904, %v942
        %v944 = vrot.slane %v943, 2
        %v945 = vmax.f32 %v943, %v944
        %v946 = vrot.slane %v945, 1
        %v947 = vmax.f32 %v945, %v946
        %v948 = vrot.slane %v905, 4
        %v949 = vmax.f32 %v905, %v948
        %v950 = vrot.slane %v949, 2
        %v951 = vmax.f32 %v949, %v950
        %v952 = vrot.slane %v951, 1
        %v953 = vmax.f32 %v951, %v952
        %v954 = vsub.f32 %v898, %v911
        %v955 = vsub.f32 %v899, %v917
        %v956 = vsub.f32 %v900, %v923
        %v957 = vsub.f32 %v901, %v929
        %v958 = vsub.f32 %v902, %v935
        %v959 = vsub.f32 %v903, %v941
        %v960 = vsub.f32 %v904, %v947
        %v961 = vsub.f32 %v905, %v953
        %v962 = vmul.f32 %v954, 1.442695
        %v963 = vpow.pop %v962
        %v964 = vmul.f32 %v955, 1.442695
        %v965 = vpow.pop %v964
        %v966 = vmul.f32 %v956, 1.442695
        %v967 = vpow.pop %v966
        %v968 = vmul.f32 %v957, 1.442695
        %v969 = vpow.pop %v968
        %v970 = vmul.f32 %v958, 1.442695
        %v971 = vpow.pop %v970
        %v972 = vmul.f32 %v959, 1.442695
        %v973 = vpow.pop %v972
        %v974 = vmul.f32 %v960, 1.442695
        %v975 = vpow.pop %v974
        %v976 = vmul.f32 %v961, 1.442695
        %v977 = vpow.pop %v976
        %v978 = vrot.slane %v963, 4
        %v979 = vadd.f32 %v963, %v978
        %v980 = vrot.slane %v979, 2
        %v981 = vadd.f32 %v979, %v980
        %v982 = vrot.slane %v981, 1
        %v983 = vadd.f32 %v981, %v982
        %v984 = vrot.slane %v965, 4
        %v985 = vadd.f32 %v965, %v984
        %v986 = vrot.slane %v985, 2
        %v987 = vadd.f32 %v985, %v986
        %v988 = vrot.slane %v987, 1
        %v989 = vadd.f32 %v987, %v988
        %v990 = vrot.slane %v967, 4
        %v991 = vadd.f32 %v967, %v990
        %v992 = vrot.slane %v991, 2
        %v993 = vadd.f32 %v991, %v992
        %v994 = vrot.slane %v993, 1
        %v995 = vadd.f32 %v993, %v994
        %v996 = vrot.slane %v969, 4
        %v997 = vadd.f32 %v969, %v996
        %v998 = vrot.slane %v997, 2
        %v999 = vadd.f32 %v997, %v998
        %v1000 = vrot.slane %v999, 1
        %v1001 = vadd.f32 %v999, %v1000
        %v1002 = vrot.slane %v971, 4
        %v1003 = vadd.f32 %v971, %v1002
        %v1004 = vrot.slane %v1003, 2
        %v1005 = vadd.f32 %v1003, %v1004
        %v1006 = vrot.slane %v1005, 1
        %v1007 = vadd.f32 %v1005, %v1006
        %v1008 = vrot.slane %v973, 4
        %v1009 = vadd.f32 %v973, %v1008
        %v1010 = vrot.slane %v1009, 2
        %v1011 = vadd.f32 %v1009, %v1010
        %v1012 = vrot.slane %v1011, 1
        %v1013 = vadd.f32 %v1011, %v1012
        %v1014 = vrot.slane %v975, 4
        %v1015 = vadd.f32 %v975, %v1014
        %v1016 = vrot.slane %v1015, 2
        %v1017 = vadd.f32 %v1015, %v1016
        %v1018 = vrot.slane %v1017, 1
        %v1019 = vadd.f32 %v1017, %v1018
        %v1020 = vrot.slane %v977, 4
        %v1021 = vadd.f32 %v977, %v1020
        %v1022 = vrot.slane %v1021, 2
        %v1023 = vadd.f32 %v1021, %v1022
        %v1024 = vrot.slane %v1023, 1
        %v1025 = vadd.f32 %v1023, %v1024
        %v1026 = vrcp.pop %v983
        %v1027 = vrcp.pop %v989
        %v1028 = vrcp.pop %v995
        %v1029 = vrcp.pop %v1001
        %v1030 = vrcp.pop %v1007
        %v1031 = vrcp.pop %v1013
        %v1032 = vrcp.pop %v1019
        %v1033 = vrcp.pop %v1025
        %v1034 = vmul.f32 %v963, %v1026
        %v1035 = vmul.f32 %v965, %v1027
        %v1036 = vmul.f32 %v967, %v1028
        %v1037 = vmul.f32 %v969, %v1029
        %v1038 = vmul.f32 %v971, %v1030
        %v1039 = vmul.f32 %v973, %v1031
        %v1040 = vmul.f32 %v975, %v1032
        %v1041 = vmul.f32 %v977, %v1033
        %1042 = vmatpush.msra.mxu0 %v305
        %1043 = vmatpush.msra.mxu0 %v304
        %1044 = vmatpush.msra.mxu0 %v303
        %1045 = vmatpush.msra.mxu0 %v302
        %1046 = vmatpush.msra.mxu0 %v301
        %1047 = vmatpush.msra.mxu0 %v300
        %1048 = vmatpush.msra.mxu0 %v299
        %1049 = vmatpush.msra.mxu0 %v298
        %1050 = vmatpush.msra.mxu0 %v297
        %1051 = vmatpush.msra.mxu0 %v296
        %1052 = vmatpush.msra.mxu0 %v295
        %1053 = vmatpush.msra.mxu0 %v294
        %1054 = vmatpush.msra.mxu0 %v293
        %1055 = vmatpush.msra.mxu0 %v292
        %1056 = vmatpush.msra.mxu0 %v291
        %1057 = vmatpush.msra.mxu0 %v290
        %1058 = vmatmul.f32.gmra.mxu0 %v706
        %v1059 = vpop.f32.mrf.mxu0
        %v1060 = vadd.f32 0.0, %v1059
        %1061 = vmatmul.f32.gmra.mxu0 %v709
        %v1062 = vpop.f32.mrf.mxu0
        %v1063 = vadd.f32 0.0, %v1062
        %1064 = vmatmul.f32.gmra.mxu0 %v712
        %v1065 = vpop.f32.mrf.mxu0
        %v1066 = vadd.f32 0.0, %v1065
        %1067 = vmatmul.f32.gmra.mxu0 %v715
        %v1068 = vpop.f32.mrf.mxu0
        %v1069 = vadd.f32 0.0, %v1068
        %1070 = vmatmul.f32.gmra.mxu0 %v718
        %v1071 = vpop.f32.mrf.mxu0
        %v1072 = vadd.f32 0.0, %v1071
        %1073 = vmatmul.f32.gmra.mxu0 %v721
        %v1074 = vpop.f32.mrf.mxu0
        %v1075 = vadd.f32 0.0, %v1074
        %1076 = vmatmul.f32.gmra.mxu0 %v724
        %v1077 = vpop.f32.mrf.mxu0
        %v1078 = vadd.f32 0.0, %v1077
        %1079 = vmatmul.f32.gmra.mxu0 %v727
        %v1080 = vpop.f32.mrf.mxu0
        %v1081 = vadd.f32 0.0, %v1080
        %1082 = vdwg.mxu0
        %v1083 = vmul.f32 %v706, %v706
        %v1084 = vmul.f32 %v709, %v709
        %v1085 = vmul.f32 %v712, %v712
        %v1086 = vmul.f32 %v715, %v715
        %v1087 = vmul.f32 %v718, %v718
        %v1088 = vmul.f32 %v721, %v721
        %v1089 = vmul.f32 %v724, %v724
        %v1090 = vmul.f32 %v727, %v727
        %1091 = vmatpush.msra.mxu0 %v305
        %1092 = vmatpush.msra.mxu0 %v304
        %1093 = vmatpush.msra.mxu0 %v303
        %1094 = vmatpush.msra.mxu0 %v302
        %1095 = vmatpush.msra.mxu0 %v301
        %1096 = vmatpush.msra.mxu0 %v300
        %1097 = vmatpush.msra.mxu0 %v299
        %1098 = vmatpush.msra.mxu0 %v298
        %1099 = vmatpush.msra.mxu0 %v297
        %1100 = vmatpush.msra.mxu0 %v296
        %1101 = vmatpush.msra.mxu0 %v295
        %1102 = vmatpush.msra.mxu0 %v294
        %1103 = vmatpush.msra.mxu0 %v293
        %1104 = vmatpush.msra.mxu0 %v292
        %1105 = vmatpush.msra.mxu0 %v291
        %1106 = vmatpush.msra.mxu0 %v290
        %1107 = vmatmul.f32.gmra.mxu0 %v1083
        %v1108 = vpop.f32.mrf.mxu0
        %v1109 = vadd.f32 0.0, %v1108
        %1110 = vmatmul.f32.gmra.mxu0 %v1084
        %v1111 = vpop.f32.mrf.mxu0
        %v1112 = vadd.f32 0.0, %v1111
        %1113 = vmatmul.f32.gmra.mxu0 %v1085
        %v1114 = vpop.f32.mrf.mxu0
        %v1115 = vadd.f32 0.0, %v1114
        %1116 = vmatmul.f32.gmra.mxu0 %v1086
        %v1117 = vpop.f32.mrf.mxu0
        %v1118 = vadd.f32 0.0, %v1117
        %1119 = vmatmul.f32.gmra.mxu0 %v1087
        %v1120 = vpop.f32.mrf.mxu0
        %v1121 = vadd.f32 0.0, %v1120
        %1122 = vmatmul.f32.gmra.mxu0 %v1088
        %v1123 = vpop.f32.mrf.mxu0
        %v1124 = vadd.f32 0.0, %v1123
        %1125 = vmatmul.f32.gmra.mxu0 %v1089
        %v1126 = vpop.f32.mrf.mxu0
        %v1127 = vadd.f32 0.0, %v1126
        %1128 = vmatmul.f32.gmra.mxu0 %v1090
        %v1129 = vpop.f32.mrf.mxu0
        %v1130 = vadd.f32 0.0, %v1129
        %1131 = vdwg.mxu0
        %v1132 = vmul.f32 %v1060, 0.03125
        %v1133 = vmul.f32 %v1063, 0.03125
        %v1134 = vmul.f32 %v1066, 0.03125
        %v1135 = vmul.f32 %v1069, 0.03125
        %v1136 = vmul.f32 %v1072, 0.03125
        %v1137 = vmul.f32 %v1075, 0.03125
        %v1138 = vmul.f32 %v1078, 0.03125
        %v1139 = vmul.f32 %v1081, 0.03125
        %v1140 = vmul.f32 %v1109, 0.03125
        %v1141 = vmul.f32 %v1112, 0.03125
        %v1142 = vmul.f32 %v1115, 0.03125
        %v1143 = vmul.f32 %v1118, 0.03125
        %v1144 = vmul.f32 %v1121, 0.03125
        %v1145 = vmul.f32 %v1124, 0.03125
        %v1146 = vmul.f32 %v1127, 0.03125
        %v1147 = vmul.f32 %v1130, 0.03125
        %v1148 = vmul.f32 %v1132, %v1132
        %v1149 = vmul.f32 %v1133, %v1133
        %v1150 = vmul.f32 %v1134, %v1134
        %v1151 = vmul.f32 %v1135, %v1135
        %v1152 = vmul.f32 %v1136, %v1136
        %v1153 = vmul.f32 %v1137, %v1137
        %v1154 = vmul.f32 %v1138, %v1138
        %v1155 = vmul.f32 %v1139, %v1139
        %v1156 = vsub.f32 %v1140, %v1148
        %v1157 = vsub.f32 %v1141, %v1149
        %v1158 = vsub.f32 %v1142, %v1150
        %v1159 = vsub.f32 %v1143, %v1151
        %v1160 = vsub.f32 %v1144, %v1152
        %v1161 = vsub.f32 %v1145, %v1153
        %v1162 = vsub.f32 %v1146, %v1154
        %v1163 = vsub.f32 %v1147, %v1155
        %v1164 = vsub.f32 %v706, %v1132
        %v1165 = vsub.f32 %v709, %v1133
        %v1166 = vsub.f32 %v712, %v1134
        %v1167 = vsub.f32 %v715, %v1135
        %v1168 = vsub.f32 %v718, %v1136
        %v1169 = vsub.f32 %v721, %v1137
        %v1170 = vsub.f32 %v724, %v1138
        %v1171 = vsub.f32 %v727, %v1139
        %v1172 = vadd.f32 %v1156, 1e-05
        %v1173 = vadd.f32 %v1157, 1e-05
        %v1174 = vadd.f32 %v1158, 1e-05
        %v1175 = vadd.f32 %v1159, 1e-05
        %v1176 = vadd.f32 %v1160, 1e-05
        %v1177 = vadd.f32 %v1161, 1e-05
        %v1178 = vadd.f32 %v1162, 1e-05
        %v1179 = vadd.f32 %v1163, 1e-05
        %v1180 = vrsqrt.pop %v1172
        %v1181 = vmul.f32 %v1180, %v1172
        %v1182 = vmul.f32 %v1181, %v1180
        %v1183 = vmul.f32 0.5, %v1182
        %v1184 = vsub.f32 1.5, %v1183
        %v1185 = vmul.f32 %v1180, %v1184
        %vm1186 = vweird.f32 %v1172
        %vm1187 = vweird.f32 %v1180
        %vm1188 = vmor %vm1186, %vm1187
        %v1189 = vsel %vm1188, %v1180, %v1185
        %v1190 = vrsqrt.pop %v1173
        %v1191 = vmul.f32 %v1190, %v1173
        %v1192 = vmul.f32 %v1191, %v1190
        %v1193 = vmul.f32 0.5, %v1192
        %v1194 = vsub.f32 1.5, %v1193
        %v1195 = vmul.f32 %v1190, %v1194
        %vm1196 = vweird.f32 %v1173
        %vm1197 = vweird.f32 %v1190
        %vm1198 = vmor %vm1196, %vm1197
        %v1199 = vsel %vm1198, %v1190, %v1195
        %v1200 = vrsqrt.pop %v1174
        %v1201 = vmul.f32 %v1200, %v1174
        %v1202 = vmul.f32 %v1201, %v1200
        %v1203 = vmul.f32 0.5, %v1202
        %v1204 = vsub.f32 1.5, %v1203
        %v1205 = vmul.f32 %v1200, %v1204
        %vm1206 = vweird.f32 %v1174
        %vm1207 = vweird.f32 %v1200
        %vm1208 = vmor %vm1206, %vm1207
        %v1209 = vsel %vm1208, %v1200, %v1205
        %v1210 = vrsqrt.pop %v1175
        %v1211 = vmul.f32 %v1210, %v1175
        %v1212 = vmul.f32 %v1211, %v1210
        %v1213 = vmul.f32 0.5, %v1212
        %v1214 = vsub.f32 1.5, %v1213
        %v1215 = vmul.f32 %v1210, %v1214
        %vm1216 = vweird.f32 %v1175
        %vm1217 = vweird.f32 %v1210
        %vm1218 = vmor %vm1216, %vm1217
        %v1219 = vsel %vm1218, %v1210, %v1215
        %v1220 = vrsqrt.pop %v1176
        %v1221 = vmul.f32 %v1220, %v1176
        %v1222 = vmul.f32 %v1221, %v1220
        %v1223 = vmul.f32 0.5, %v1222
        %v1224 = vsub.f32 1.5, %v1223
        %v1225 = vmul.f32 %v1220, %v1224
        %vm1226 = vweird.f32 %v1176
        %vm1227 = vweird.f32 %v1220
        %vm1228 = vmor %vm1226, %vm1227
        %v1229 = vsel %vm1228, %v1220, %v1225
        %v1230 = vrsqrt.pop %v1177
        %v1231 = vmul.f32 %v1230, %v1177
        %v1232 = vmul.f32 %v1231, %v1230
        %v1233 = vmul.f32 0.5, %v1232
        %v1234 = vsub.f32 1.5, %v1233
        %v1235 = vmul.f32 %v1230, %v1234
        %vm1236 = vweird.f32 %v1177
        %vm1237 = vweird.f32 %v1230
        %vm1238 = vmor %vm1236, %vm1237
        %v1239 = vsel %vm1238, %v1230, %v1235
        %v1240 = vrsqrt.pop %v1178
        %v1241 = vmul.f32 %v1240, %v1178
        %v1242 = vmul.f32 %v1241, %v1240
        %v1243 = vmul.f32 0.5, %v1242
        %v1244 = vsub.f32 1.5, %v1243
        %v1245 = vmul.f32 %v1240, %v1244
        %vm1246 = vweird.f32 %v1178
        %vm1247 = vweird.f32 %v1240
        %vm1248 = vmor %vm1246, %vm1247
        %v1249 = vsel %vm1248, %v1240, %v1245
        %v1250 = vrsqrt.pop %v1179
        %v1251 = vmul.f32 %v1250, %v1179
        %v1252 = vmul.f32 %v1251, %v1250
        %v1253 = vmul.f32 0.5, %v1252
        %v1254 = vsub.f32 1.5, %v1253
        %v1255 = vmul.f32 %v1250, %v1254
        %vm1256 = vweird.f32 %v1179
        %vm1257 = vweird.f32 %v1250
        %vm1258 = vmor %vm1256, %vm1257
        %v1259 = vsel %vm1258, %v1250, %v1255
        %v1260 = vmul.f32 %v1164, %v1189
        %v1261 = vmul.f32 %v1165, %v1199
        %v1262 = vmul.f32 %v1166, %v1209
        %v1263 = vmul.f32 %v1167, %v1219
        %v1264 = vmul.f32 %v1168, %v1229
        %v1265 = vmul.f32 %v1169, %v1239
        %v1266 = vmul.f32 %v1170, %v1249
        %v1267 = vmul.f32 %v1171, %v1259
        %v1268 = vmul.f32 %v1260, %v433
        %v1269 = vmul.f32 %v1261, %v433
        %v1270 = vmul.f32 %v1262, %v433
        %v1271 = vmul.f32 %v1263, %v433
        %v1272 = vmul.f32 %v1264, %v433
        %v1273 = vmul.f32 %v1265, %v433
        %v1274 = vmul.f32 %v1266, %v433
        %v1275 = vmul.f32 %v1267, %v433
        %v1276 = vadd.f32 %v1268, %v435
        %v1277 = vadd.f32 %v1269, %v435
        %v1278 = vadd.f32 %v1270, %v435
        %v1279 = vadd.f32 %v1271, %v435
        %v1280 = vadd.f32 %v1272, %v435
        %v1281 = vadd.f32 %v1273, %v435
        %v1282 = vadd.f32 %v1274, %v435
        %v1283 = vadd.f32 %v1275, %v435
        %v1284 = vmul.f32 %v1034, %v1276
        %v1285 = vmul.f32 %v1035, %v1277
        %v1286 = vmul.f32 %v1036, %v1278
        %v1287 = vmul.f32 %v1037, %v1279
        %v1288 = vmul.f32 %v1038, %v1280
        %v1289 = vmul.f32 %v1039, %v1281
        %v1290 = vmul.f32 %v1040, %v1282
        %v1291 = vmul.f32 %v1041, %v1283
        %v1292 = vrot.slane %v1284, 4
        %v1293 = vadd.f32 %v1284, %v1292
        %v1294 = vrot.slane %v1293, 2
        %v1295 = vadd.f32 %v1293, %v1294
        %v1296 = vrot.slane %v1295, 1
        %v1297 = vadd.f32 %v1295, %v1296
        %v1298 = vrot.slane %v1285, 4
        %v1299 = vadd.f32 %v1285, %v1298
        %v1300 = vrot.slane %v1299, 2
        %v1301 = vadd.f32 %v1299, %v1300
        %v1302 = vrot.slane %v1301, 1
        %v1303 = vadd.f32 %v1301, %v1302
        %v1304 = vrot.slane %v1286, 4
        %v1305 = vadd.f32 %v1286, %v1304
        %v1306 = vrot.slane %v1305, 2
        %v1307 = vadd.f32 %v1305, %v1306
        %v1308 = vrot.slane %v1307, 1
        %v1309 = vadd.f32 %v1307, %v1308
        %v1310 = vrot.slane %v1287, 4
        %v1311 = vadd.f32 %v1287, %v1310
        %v1312 = vrot.slane %v1311, 2
        %v1313 = vadd.f32 %v1311, %v1312
        %v1314 = vrot.slane %v1313, 1
        %v1315 = vadd.f32 %v1313, %v1314
        %v1316 = vrot.slane %v1288, 4
        %v1317 = vadd.f32 %v1288, %v1316
        %v1318 = vrot.slane %v1317, 2
        %v1319 = vadd.f32 %v1317, %v1318
        %v1320 = vrot.slane %v1319, 1
        %v1321 = vadd.f32 %v1319, %v1320
        %v1322 = vrot.slane %v1289, 4
        %v1323 = vadd.f32 %v1289, %v1322
        %v1324 = vrot.slane %v1323, 2
        %v1325 = vadd.f32 %v1323, %v1324
        %v1326 = vrot.slane %v1325, 1
        %v1327 = vadd.f32 %v1325, %v1326
        %v1328 = vrot.slane %v1290, 4
        %v1329 = vadd.f32 %v1290, %v1328
        %v1330 = vrot.slane %v1329, 2
        %v1331 = vadd.f32 %v1329, %v1330
        %v1332 = vrot.slane %v1331, 1
        %v1333 = vadd.f32 %v1331, %v1332
        %v1334 = vrot.slane %v1291, 4
        %v1335 = vadd.f32 %v1291, %v1334
        %v1336 = vrot.slane %v1335, 2
        %v1337 = vadd.f32 %v1335, %v1336
        %v1338 = vrot.slane %v1337, 1
        %v1339 = vadd.f32 %v1337, %v1338
        %vm1340 = vcmp.ge.f32.partialorder %v1297, 0.0
        %vm1341 = vcmp.ge.f32.partialorder %v1303, 0.0
        %vm1342 = vcmp.ge.f32.partialorder %v1309, 0.0
        %vm1343 = vcmp.ge.f32.partialorder %v1315, 0.0
        %vm1344 = vcmp.ge.f32.partialorder %v1321, 0.0
        %vm1345 = vcmp.ge.f32.partialorder %v1327, 0.0
        %vm1346 = vcmp.ge.f32.partialorder %v1333, 0.0
        %vm1347 = vcmp.ge.f32.partialorder %v1339, 0.0
        %v1348 = vmul.f32 %v1297, 0.01
        %v1349 = vmul.f32 %v1303, 0.01
        %v1350 = vmul.f32 %v1309, 0.01
        %v1351 = vmul.f32 %v1315, 0.01
        %v1352 = vmul.f32 %v1321, 0.01
        %v1353 = vmul.f32 %v1327, 0.01
        %v1354 = vmul.f32 %v1333, 0.01
        %v1355 = vmul.f32 %v1339, 0.01
        %v1356 = vsel %vm1340, %v1297, %v1348
        %v1357 = vsel %vm1341, %v1303, %v1349
        %v1358 = vsel %vm1342, %v1309, %v1350
        %v1359 = vsel %vm1343, %v1315, %v1351
        %v1360 = vsel %vm1344, %v1321, %v1352
        %v1361 = vsel %vm1345, %v1327, %v1353
        %v1362 = vsel %vm1346, %v1333, %v1354
        %v1363 = vsel %vm1347, %v1339, %v1355
        %vm1372 = vcmask 1041409
        %v1373 = vsel %vm1372, %v1357, %v1356
        %vm1374 = vcmask 1042434
        %v1375 = vsel %vm1374, %v1358, %v1373
        %vm1376 = vcmask 1043459
        %v1377 = vsel %vm1376, %v1359, %v1375
        %vm1378 = vcmask 1044484
        %v1379 = vsel %vm1378, %v1360, %v1377
        %vm1380 = vcmask 1045509
        %v1381 = vsel %vm1380, %v1361, %v1379
        %vm1382 = vcmask 1046534
        %v1383 = vsel %vm1382, %v1362, %v1381
        %vm1384 = vcmask 1047559
        %v1385 = vsel %vm1384, %v1363, %v1383
        %1387 = vst [vmem:[%s287] sm:$0xff] %v1385
        %s1388 = sand.u32 %s127, 1
        %s1389 = scalar_lea.sflag [#allocation4], %s1388
        %s1390 = sand.u32 %s127, 1
        %s1391 = smul.addr %s1390, 8
        %s1392 = scalar_lea.vmem [#allocation10], %s1391
        // Predicated region
        $region53: #{tpu_custom_call.1} parent=35 // pred_check
          %p1393 = pneg %p137
        $region54: #{tpu_custom_call.1} parent=35 // pred_check_branch
          %1395 = sbr.rel (%p1393) target = $region56
        $region55: #{tpu_custom_call.1} parent=35 // pred_region
          %1397 = vsyncadd %s1389, 0
          %s1398 = smul.addr %s25, 8
          %s1399 = scalar_lea.hbm %s4, %s1398
          %s1401 = sshll.u32 %s1392, 4
          %s1402 = int_to_ptr.vmem [resolvable:$true] %s1401
          %s1403 = sshll.u32 %s1399, 4
          %s1404 = int_to_ptr.hbm [resolvable:$true] %s1403
          %1406 = dma.vmem_to_hbm [thread:$0]  %s1402, 128, %s1404, %s1389
        $region56: #{tpu_custom_call.1} parent=35 // pred_fallthru
          _
      $region36: #{tpu_custom_call.1} parent=5 // pred_fallthru
        _
      %p1407 = scmp.le.s32.totalorder 2, %s20
      // Predicated region
      $region57: #{tpu_custom_call.1} parent=5 // pred_check
        %p1408 = pneg %p1407
      $region58: #{tpu_custom_call.1} parent=5 // pred_check_branch
        %1410 = sbr.rel (%p1408) target = $region60
      $region59: #{tpu_custom_call.1} parent=5 // pred_region
        %s1411 = ssub.s32 %s20, 2
        // Predicated region
        $region61: #{tpu_custom_call.1} parent=59 // pred_check
          %p1412 = pneg %p143
        $region62: #{tpu_custom_call.1} parent=59 // pred_check_branch
          %1414 = sbr.rel (%p1412) target = $region64
        $region63: #{tpu_custom_call.1} parent=59 // pred_region
          %s1415 = sand.u32 %s128, 1
          %s1416 = scalar_lea.sflag [#allocation4], %s1415
          %s1417 = sand.u32 %s128, 1
          %s1418 = smul.addr %s1417, 8
          %s1419 = scalar_lea.vmem [#allocation10], %s1418
          %1421 = dma.done %s1416, 128
        $region64: #{tpu_custom_call.1} parent=59 // pred_fallthru
          _
      $region60: #{tpu_custom_call.1} parent=5 // pred_fallthru
        _
    $region6: #{tpu_custom_call.1} parent=1 // loop_footer
      %s24 = sadd.s32 1, %s20
    $region7: #{tpu_custom_call.1} parent=1 // loop_footer_branch
      %19 = sbr.rel target = $region3
    $region8: #{tpu_custom_call.1} parent=1 // loop_exit
      _
    %1422 = vsyncpa [#allocation3], 1
    %s1423 = scalar_lea.sflag [#allocation3], 1
    %1424 = vsyncpa %s1423, 1
    %1425 = vsyncpa [#allocation6], 1
    %s1426 = scalar_lea.sflag [#allocation6], 1
    %1427 = vsyncpa %s1426, 1
    %1428 = vsyncpa [#allocation9], 1
    %1429 = vsyncpa [#allocation4], 1
    %s1430 = scalar_lea.sflag [#allocation4], 1
    %1431 = vsyncpa %s1430, 1

</llo_original>
